<compile_context>
chip_gen: v5e
topology: v5e:2x2
jax: 0.10.0
libtpu: 0.0.40
codegen_flags: <defaults>
</compile_context>

<pallas_src>
import functools

import jax
import jax.numpy as jnp
import numpy as np
from jax import lax
from jax.experimental import pallas as pl
from jax.experimental.pallas import tpu as pltpu

_BIG = 1e30          # "no such-class pixel" sentinel (f32-safe)
_BIG_THRESH = 1e29   # anything above this means "no such pixel" -> 0
_UNROLL_LIMIT = 32   # fully unroll in-kernel loops up to this trip count


def _loop(n, body):
    """Unrolled Python loop for short trip counts, scf.for otherwise."""
    if n <= _UNROLL_LIMIT:
        for i in range(n):
            body(i)
    else:
        def wrapped(i, carry):
            body(i)
            return carry
        lax.fori_loop(0, n, wrapped, 0)


def _hausdorff_kernel(pred_ref, targ_ref, out_ref,
                      pen_ref, g_ref, gt_ref, f_ref, *, h, w, alpha):
    """One batch element per grid step; exact separable squared EDT."""
    big = jnp.float32(_BIG)
    pred = pred_ref[0]                     # (h, w) f32, w on lanes
    targ = targ_ref[0]

    pm = pred > 0.5
    tm = targ > 0.5
    zeros = jnp.zeros((h, w), jnp.float32)
    bigs = jnp.full((h, w), big, jnp.float32)
    # Additive penalties (0 on class-c pixels, BIG elsewhere); the four fields
    # [pred-fg | pred-bg | targ-fg | targ-bg] are stacked along lanes.
    pen_ref[...] = jnp.concatenate(
        [jnp.where(pm, zeros, bigs), jnp.where(pm, bigs, zeros),
         jnp.where(tm, zeros, bigs), jnp.where(tm, bigs, zeros)], axis=1)

    # ---------------- pass 1: reduce over rows y' ----------------
    # g[y, c] = min_{y'} (y - y')^2 + pen[y', c]
    yq = lax.broadcasted_iota(jnp.int32, (h, 1), 0).astype(jnp.float32)
    g_ref[...] = jnp.full((h, 4 * w), big, jnp.float32)

    def row_step(yp):
        dy = yq - jnp.asarray(yp, jnp.float32)            # (h, 1)
        pen_row = pen_ref[pl.ds(yp, 1), :]                # (1, 4w) sublane slice
        g_ref[...] = jnp.minimum(g_ref[...], dy * dy + pen_row)

    _loop(h, row_step)

    # One transpose + lane-restack so pass 2 is also one lane-dense tile with
    # cheap per-iteration sublane slices (no lane gathers in the hot loop).
    g_t = g_ref[...].T                                    # (4w, h)
    gt_ref[...] = jnp.concatenate(
        [g_t[k * w:(k + 1) * w, :] for k in range(4)], axis=1)   # (w, 4h)

    # ---------------- pass 2: reduce over columns x' ----------------
    # f[x, k*h + y] = min_{x'} (x - x')^2 + g_k[y, x']  (exact squared EDT)
    xq = lax.broadcasted_iota(jnp.int32, (w, 1), 0).astype(jnp.float32)
    f_ref[...] = jnp.full((w, 4 * h), big, jnp.float32)

    def col_step(xp):
        dx = xq - jnp.asarray(xp, jnp.float32)            # (w, 1)
        g_row = gt_ref[pl.ds(xp, 1), :]                   # (1, 4h) sublane slice
        f_ref[...] = jnp.minimum(f_ref[...], dx * dx + g_row)

    _loop(w, col_step)

    # "no such-class pixel" -> 0, matching the reference's empty-mask branch.
    # TODO(synk): raw scipy edt of an all-True mask is ill-defined; like the
    # in-file numpy reference we return 0 there.
    f = f_ref[...]
    f = jnp.where(f < jnp.float32(_BIG_THRESH), f, 0.0)

    if alpha == 2.0:
        dmat = f                                          # squared EDT directly
    else:
        dmat = jnp.power(f, jnp.float32(0.5 * alpha))     # (d^2)^(a/2) = d^a

    # field**alpha == sum over the stacked fg/bg blocks (one term is 0/pixel).
    errT = ((pred - targ) ** 2).T                         # (w, h)
    err4 = jnp.concatenate([errT, errT, errT, errT], axis=1)   # (w, 4h)
    partial = jnp.sum(err4 * dmat)

    # Lane-dense per-batch partial sum; the mean is taken in the wrapper so
    # the batch grid axis stays truly parallel.
    out_ref[...] = jnp.broadcast_to(partial, (1, 1, 128)).astype(jnp.float32)


def hausdorff_dt_loss(pred, target, alpha=2.0):
    assert pred.ndim == 4, "only 2D inputs (B, 1, H, W) supported here"
    # TODO(synk): the torch module also accepts 5-D (3-D volumes); not implemented.
    assert pred.shape == target.shape
    b, c, h, w = pred.shape
    assert c == 1, "binary single-channel input expected"

    pred_f = pred.reshape(b, h, w).astype(jnp.float32)
    targ_f = target.reshape(b, h, w).astype(jnp.float32)

    kernel = functools.partial(_hausdorff_kernel, h=h, w=w, alpha=alpha)

    partials = pl.pallas_call(
        kernel,
        out_shape=jax.ShapeDtypeStruct((b, 1, 128), jnp.float32),
        grid=(b,),
        in_specs=[
            pl.BlockSpec((1, h, w), lambda i: (i, 0, 0)),
            pl.BlockSpec((1, h, w), lambda i: (i, 0, 0)),
        ],
        out_specs=pl.BlockSpec((1, 1, 128), lambda i: (i, 0, 0)),
        scratch_shapes=[
            pltpu.VMEM((h, 4 * w), jnp.float32),   # stacked penalties
            pltpu.VMEM((h, 4 * w), jnp.float32),   # pass-1 column distances
            pltpu.VMEM((w, 4 * h), jnp.float32),   # restacked transpose
            pltpu.VMEM((w, 4 * h), jnp.float32),   # pass-2 squared EDTs
        ],
        compiler_params=pltpu.CompilerParams(
            dimension_semantics=("parallel",)),
    )(pred_f, targ_f)

    total = b * c * h * w
    return jnp.sum(partials[:, 0, 0]) / jnp.float32(total)


def _reference_loss(pred, target, alpha=2.0):
    """Pure-numpy reference reproducing the PyTorch module semantics."""
    pred = np.asarray(pred, np.float32)
    target = np.asarray(target, np.float32)
    bsz, _, h, w = pred.shape
    ys, xs = np.meshgrid(np.arange(h), np.arange(w), indexing="ij")
    coords = np.stack([ys.ravel(), xs.ravel()], -1).astype(np.float32)

    def dist_field(img):  # img: (1, h, w)
        mask = img[0] > 0.5
        if not mask.any():
            return np.zeros((1, h, w), np.float32)
        m = mask.ravel()
        d2 = ((coords[:, None, :] - coords[None, :, :]) ** 2).sum(-1)
        d2 = np.where(m[:, None] != m[None, :], d2, np.inf)
        mind = np.sqrt(d2.min(axis=1))
        mind = np.where(np.isinf(mind), 0.0, mind)
        return mind.reshape(1, h, w).astype(np.float32)

    pred_dt = np.stack([dist_field(pred[i]) for i in range(bsz)])
    targ_dt = np.stack([dist_field(target[i]) for i in range(bsz)])
    pred_error = (pred - target) ** 2
    distance = pred_dt ** alpha + targ_dt ** alpha
    return float((pred_error * distance).mean())


if __name__ == "__main__":
    key = jax.random.PRNGKey(0)
    k1, k2 = jax.random.split(key)
    B, C, H, W = 2, 1, 16, 16
    pred = jax.random.uniform(k1, (B, C, H, W), dtype=jnp.float32)
    target = (jax.random.uniform(k2, (B, C, H, W)) > 0.5).astype(jnp.float32)

    loss = hausdorff_dt_loss(pred, target, alpha=2.0)
    loss = jax.block_until_ready(loss)

    ref = _reference_loss(np.asarray(pred), np.asarray(target), alpha=2.0)
    np.testing.assert_allclose(float(loss), ref, rtol=1e-4, atol=1e-5)

    print("KERNEL_OK")
</pallas_src>

<mosaic_0001>
module attributes {stable_mosaic.version = 11 : i64} {
  func.func @_hausdorff_kernel(%arg0: i32, %arg1: memref<1x16x16xf32, #tpu.memory_space<vmem>>, %arg2: memref<1x16x16xf32, #tpu.memory_space<vmem>>, %arg3: memref<1x1x128xf32, #tpu.memory_space<vmem>>, %arg4: memref<16x64xf32, #tpu.memory_space<vmem>>, %arg5: memref<16x64xf32, #tpu.memory_space<vmem>>, %arg6: memref<16x64xf32, #tpu.memory_space<vmem>>, %arg7: memref<16x64xf32, #tpu.memory_space<vmem>>) attributes {dimension_semantics = [#tpu.dimension_semantics<parallel>], iteration_bounds = array<i64: 2>, scalar_prefetch = 0 : i64, scratch_operands = 4 : i64, tpu.core_type = #tpu.core_type<tc>, window_params = [{transform_indices = @transform_0, window_bounds = array<i64: 1, 16, 16>}, {transform_indices = @transform_1, window_bounds = array<i64: 1, 16, 16>}, {transform_indices = @transform_2, window_bounds = array<i64: 1, 1, 128>}]} {
    %c0 = arith.constant 0 : index
    %c0_0 = arith.constant 0 : index
    %c0_1 = arith.constant 0 : index
    %0 = vector.load %arg1[%c0, %c0_0, %c0_1] : memref<1x16x16xf32, #tpu.memory_space<vmem>>, vector<1x16x16xf32>
    %1 = vector.shape_cast %0 : vector<1x16x16xf32> to vector<16x16xf32>
    %c0_2 = arith.constant 0 : index
    %c0_3 = arith.constant 0 : index
    %c0_4 = arith.constant 0 : index
    %2 = vector.load %arg2[%c0_2, %c0_3, %c0_4] : memref<1x16x16xf32, #tpu.memory_space<vmem>>, vector<1x16x16xf32>
    %3 = vector.shape_cast %2 : vector<1x16x16xf32> to vector<16x16xf32>
    %cst = arith.constant 5.000000e-01 : f32
    %4 = vector.broadcast %cst : f32 to vector<16x16xf32>
    %5 = arith.cmpf ogt, %1, %4 : vector<16x16xf32>
    %cst_5 = arith.constant 5.000000e-01 : f32
    %6 = vector.broadcast %cst_5 : f32 to vector<16x16xf32>
    %7 = arith.cmpf ogt, %3, %6 : vector<16x16xf32>
    %cst_6 = arith.constant 0.000000e+00 : f32
    %8 = vector.broadcast %cst_6 : f32 to vector<16x16xf32>
    %cst_7 = arith.constant 1.000000e+30 : f32
    %9 = vector.broadcast %cst_7 : f32 to vector<16x16xf32>
    %10 = arith.select %5, %8, %9 : vector<16x16xi1>, vector<16x16xf32>
    %11 = arith.select %5, %9, %8 : vector<16x16xi1>, vector<16x16xf32>
    %12 = arith.select %7, %8, %9 : vector<16x16xi1>, vector<16x16xf32>
    %13 = arith.select %7, %9, %8 : vector<16x16xi1>, vector<16x16xf32>
    %14 = tpu.concatenate %10, %11, %12, %13 in 1 : vector<16x16xf32>, vector<16x16xf32>, vector<16x16xf32>, vector<16x16xf32> -> vector<16x64xf32>
    %c0_8 = arith.constant 0 : index
    %c0_9 = arith.constant 0 : index
    %15 = vector.load %arg4[%c0_8, %c0_9] : memref<16x64xf32, #tpu.memory_space<vmem>>, vector<16x64xf32>
    tpu.vector_store %arg4[%c0_8, %c0_9], %14 {strides = array<i32>} : memref<16x64xf32, #tpu.memory_space<vmem>>, vector<16x64xf32>,
    %16 = tpu.iota {dimensions = array<i32: 0>} : vector<16x1xi32>
    %17 = arith.sitofp %16 : vector<16x1xi32> to vector<16x1xf32>
    %cst_10 = arith.constant 1.000000e+30 : f32
    %18 = vector.broadcast %cst_10 : f32 to vector<16x64xf32>
    %c0_11 = arith.constant 0 : index
    %c0_12 = arith.constant 0 : index
    %19 = vector.load %arg5[%c0_11, %c0_12] : memref<16x64xf32, #tpu.memory_space<vmem>>, vector<16x64xf32>
    tpu.vector_store %arg5[%c0_11, %c0_12], %18 {strides = array<i32>} : memref<16x64xf32, #tpu.memory_space<vmem>>, vector<16x64xf32>,
    %cst_13 = arith.constant 0.000000e+00 : f32
    %20 = vector.broadcast %cst_13 : f32 to vector<16x1xf32>
    %21 = arith.subf %17, %20 : vector<16x1xf32>
    %c0_14 = arith.constant 0 : index
    %c0_15 = arith.constant 0 : index
    %22 = vector.load %arg4[%c0_14, %c0_15] : memref<16x64xf32, #tpu.memory_space<vmem>>, vector<1x64xf32>
    %c0_16 = arith.constant 0 : index
    %c0_17 = arith.constant 0 : index
    %23 = vector.load %arg5[%c0_16, %c0_17] : memref<16x64xf32, #tpu.memory_space<vmem>>, vector<16x64xf32>
    %24 = arith.mulf %21, %21 : vector<16x1xf32>
    %25 = vector.broadcast %24 : vector<16x1xf32> to vector<16x64xf32>
    %26 = vector.broadcast %22 : vector<1x64xf32> to vector<16x64xf32>
    %27 = arith.addf %25, %26 : vector<16x64xf32>
    %28 = arith.minimumf %23, %27 : vector<16x64xf32>
    %c0_18 = arith.constant 0 : index
    %c0_19 = arith.constant 0 : index
    %29 = vector.load %arg5[%c0_18, %c0_19] : memref<16x64xf32, #tpu.memory_space<vmem>>, vector<16x64xf32>
    tpu.vector_store %arg5[%c0_18, %c0_19], %28 {strides = array<i32>} : memref<16x64xf32, #tpu.memory_space<vmem>>, vector<16x64xf32>,
    %cst_20 = arith.constant 1.000000e+00 : f32
    %30 = vector.broadcast %cst_20 : f32 to vector<16x1xf32>
    %31 = arith.subf %17, %30 : vector<16x1xf32>
    %c1 = arith.constant 1 : index
    %c0_21 = arith.constant 0 : index
    %32 = vector.load %arg4[%c1, %c0_21] : memref<16x64xf32, #tpu.memory_space<vmem>>, vector<1x64xf32>
    %c0_22 = arith.constant 0 : index
    %c0_23 = arith.constant 0 : index
    %33 = vector.load %arg5[%c0_22, %c0_23] : memref<16x64xf32, #tpu.memory_space<vmem>>, vector<16x64xf32>
    %34 = arith.mulf %31, %31 : vector<16x1xf32>
    %35 = vector.broadcast %34 : vector<16x1xf32> to vector<16x64xf32>
    %36 = vector.broadcast %32 : vector<1x64xf32> to vector<16x64xf32>
    %37 = arith.addf %35, %36 : vector<16x64xf32>
    %38 = arith.minimumf %33, %37 : vector<16x64xf32>
    %c0_24 = arith.constant 0 : index
    %c0_25 = arith.constant 0 : index
    %39 = vector.load %arg5[%c0_24, %c0_25] : memref<16x64xf32, #tpu.memory_space<vmem>>, vector<16x64xf32>
    tpu.vector_store %arg5[%c0_24, %c0_25], %38 {strides = array<i32>} : memref<16x64xf32, #tpu.memory_space<vmem>>, vector<16x64xf32>,
    %cst_26 = arith.constant 2.000000e+00 : f32
    %40 = vector.broadcast %cst_26 : f32 to vector<16x1xf32>
    %41 = arith.subf %17, %40 : vector<16x1xf32>
    %c2 = arith.constant 2 : index
    %c0_27 = arith.constant 0 : index
    %42 = vector.load %arg4[%c2, %c0_27] : memref<16x64xf32, #tpu.memory_space<vmem>>, vector<1x64xf32>
    %c0_28 = arith.constant 0 : index
    %c0_29 = arith.constant 0 : index
    %43 = vector.load %arg5[%c0_28, %c0_29] : memref<16x64xf32, #tpu.memory_space<vmem>>, vector<16x64xf32>
    %44 = arith.mulf %41, %41 : vector<16x1xf32>
    %45 = vector.broadcast %44 : vector<16x1xf32> to vector<16x64xf32>
    %46 = vector.broadcast %42 : vector<1x64xf32> to vector<16x64xf32>
    %47 = arith.addf %45, %46 : vector<16x64xf32>
    %48 = arith.minimumf %43, %47 : vector<16x64xf32>
    %c0_30 = arith.constant 0 : index
    %c0_31 = arith.constant 0 : index
    %49 = vector.load %arg5[%c0_30, %c0_31] : memref<16x64xf32, #tpu.memory_space<vmem>>, vector<16x64xf32>
    tpu.vector_store %arg5[%c0_30, %c0_31], %48 {strides = array<i32>} : memref<16x64xf32, #tpu.memory_space<vmem>>, vector<16x64xf32>,
    %cst_32 = arith.constant 3.000000e+00 : f32
    %50 = vector.broadcast %cst_32 : f32 to vector<16x1xf32>
    %51 = arith.subf %17, %50 : vector<16x1xf32>
    %c3 = arith.constant 3 : index
    %c0_33 = arith.constant 0 : index
    %52 = vector.load %arg4[%c3, %c0_33] : memref<16x64xf32, #tpu.memory_space<vmem>>, vector<1x64xf32>
    %c0_34 = arith.constant 0 : index
    %c0_35 = arith.constant 0 : index
    %53 = vector.load %arg5[%c0_34, %c0_35] : memref<16x64xf32, #tpu.memory_space<vmem>>, vector<16x64xf32>
    %54 = arith.mulf %51, %51 : vector<16x1xf32>
    %55 = vector.broadcast %54 : vector<16x1xf32> to vector<16x64xf32>
    %56 = vector.broadcast %52 : vector<1x64xf32> to vector<16x64xf32>
    %57 = arith.addf %55, %56 : vector<16x64xf32>
    %58 = arith.minimumf %53, %57 : vector<16x64xf32>
    %c0_36 = arith.constant 0 : index
    %c0_37 = arith.constant 0 : index
    %59 = vector.load %arg5[%c0_36, %c0_37] : memref<16x64xf32, #tpu.memory_space<vmem>>, vector<16x64xf32>
    tpu.vector_store %arg5[%c0_36, %c0_37], %58 {strides = array<i32>} : memref<16x64xf32, #tpu.memory_space<vmem>>, vector<16x64xf32>,
    %cst_38 = arith.constant 4.000000e+00 : f32
    %60 = vector.broadcast %cst_38 : f32 to vector<16x1xf32>
    %61 = arith.subf %17, %60 : vector<16x1xf32>
    %c4 = arith.constant 4 : index
    %c0_39 = arith.constant 0 : index
    %62 = vector.load %arg4[%c4, %c0_39] : memref<16x64xf32, #tpu.memory_space<vmem>>, vector<1x64xf32>
    %c0_40 = arith.constant 0 : index
    %c0_41 = arith.constant 0 : index
    %63 = vector.load %arg5[%c0_40, %c0_41] : memref<16x64xf32, #tpu.memory_space<vmem>>, vector<16x64xf32>
    %64 = arith.mulf %61, %61 : vector<16x1xf32>
    %65 = vector.broadcast %64 : vector<16x1xf32> to vector<16x64xf32>
    %66 = vector.broadcast %62 : vector<1x64xf32> to vector<16x64xf32>
    %67 = arith.addf %65, %66 : vector<16x64xf32>
    %68 = arith.minimumf %63, %67 : vector<16x64xf32>
    %c0_42 = arith.constant 0 : index
    %c0_43 = arith.constant 0 : index
    %69 = vector.load %arg5[%c0_42, %c0_43] : memref<16x64xf32, #tpu.memory_space<vmem>>, vector<16x64xf32>
    tpu.vector_store %arg5[%c0_42, %c0_43], %68 {strides = array<i32>} : memref<16x64xf32, #tpu.memory_space<vmem>>, vector<16x64xf32>,
    %cst_44 = arith.constant 5.000000e+00 : f32
    %70 = vector.broadcast %cst_44 : f32 to vector<16x1xf32>
    %71 = arith.subf %17, %70 : vector<16x1xf32>
    %c5 = arith.constant 5 : index
    %c0_45 = arith.constant 0 : index
    %72 = vector.load %arg4[%c5, %c0_45] : memref<16x64xf32, #tpu.memory_space<vmem>>, vector<1x64xf32>
    %c0_46 = arith.constant 0 : index
    %c0_47 = arith.constant 0 : index
    %73 = vector.load %arg5[%c0_46, %c0_47] : memref<16x64xf32, #tpu.memory_space<vmem>>, vector<16x64xf32>
    %74 = arith.mulf %71, %71 : vector<16x1xf32>
    %75 = vector.broadcast %74 : vector<16x1xf32> to vector<16x64xf32>
    %76 = vector.broadcast %72 : vector<1x64xf32> to vector<16x64xf32>
    %77 = arith.addf %75, %76 : vector<16x64xf32>
    %78 = arith.minimumf %73, %77 : vector<16x64xf32>
    %c0_48 = arith.constant 0 : index
    %c0_49 = arith.constant 0 : index
    %79 = vector.load %arg5[%c0_48, %c0_49] : memref<16x64xf32, #tpu.memory_space<vmem>>, vector<16x64xf32>
    tpu.vector_store %arg5[%c0_48, %c0_49], %78 {strides = array<i32>} : memref<16x64xf32, #tpu.memory_space<vmem>>, vector<16x64xf32>,
    %cst_50 = arith.constant 6.000000e+00 : f32
    %80 = vector.broadcast %cst_50 : f32 to vector<16x1xf32>
    %81 = arith.subf %17, %80 : vector<16x1xf32>
    %c6 = arith.constant 6 : index
    %c0_51 = arith.constant 0 : index
    %82 = vector.load %arg4[%c6, %c0_51] : memref<16x64xf32, #tpu.memory_space<vmem>>, vector<1x64xf32>
    %c0_52 = arith.constant 0 : index
    %c0_53 = arith.constant 0 : index
    %83 = vector.load %arg5[%c0_52, %c0_53] : memref<16x64xf32, #tpu.memory_space<vmem>>, vector<16x64xf32>
    %84 = arith.mulf %81, %81 : vector<16x1xf32>
    %85 = vector.broadcast %84 : vector<16x1xf32> to vector<16x64xf32>
    %86 = vector.broadcast %82 : vector<1x64xf32> to vector<16x64xf32>
    %87 = arith.addf %85, %86 : vector<16x64xf32>
    %88 = arith.minimumf %83, %87 : vector<16x64xf32>
    %c0_54 = arith.constant 0 : index
    %c0_55 = arith.constant 0 : index
    %89 = vector.load %arg5[%c0_54, %c0_55] : memref<16x64xf32, #tpu.memory_space<vmem>>, vector<16x64xf32>
    tpu.vector_store %arg5[%c0_54, %c0_55], %88 {strides = array<i32>} : memref<16x64xf32, #tpu.memory_space<vmem>>, vector<16x64xf32>,
    %cst_56 = arith.constant 7.000000e+00 : f32
    %90 = vector.broadcast %cst_56 : f32 to vector<16x1xf32>
    %91 = arith.subf %17, %90 : vector<16x1xf32>
    %c7 = arith.constant 7 : index
    %c0_57 = arith.constant 0 : index
    %92 = vector.load %arg4[%c7, %c0_57] : memref<16x64xf32, #tpu.memory_space<vmem>>, vector<1x64xf32>
    %c0_58 = arith.constant 0 : index
    %c0_59 = arith.constant 0 : index
    %93 = vector.load %arg5[%c0_58, %c0_59] : memref<16x64xf32, #tpu.memory_space<vmem>>, vector<16x64xf32>
    %94 = arith.mulf %91, %91 : vector<16x1xf32>
    %95 = vector.broadcast %94 : vector<16x1xf32> to vector<16x64xf32>
    %96 = vector.broadcast %92 : vector<1x64xf32> to vector<16x64xf32>
    %97 = arith.addf %95, %96 : vector<16x64xf32>
    %98 = arith.minimumf %93, %97 : vector<16x64xf32>
    %c0_60 = arith.constant 0 : index
    %c0_61 = arith.constant 0 : index
    %99 = vector.load %arg5[%c0_60, %c0_61] : memref<16x64xf32, #tpu.memory_space<vmem>>, vector<16x64xf32>
    tpu.vector_store %arg5[%c0_60, %c0_61], %98 {strides = array<i32>} : memref<16x64xf32, #tpu.memory_space<vmem>>, vector<16x64xf32>,
    %cst_62 = arith.constant 8.000000e+00 : f32
    %100 = vector.broadcast %cst_62 : f32 to vector<16x1xf32>
    %101 = arith.subf %17, %100 : vector<16x1xf32>
    %c8 = arith.constant 8 : index
    %c0_63 = arith.constant 0 : index
    %102 = vector.load %arg4[%c8, %c0_63] : memref<16x64xf32, #tpu.memory_space<vmem>>, vector<1x64xf32>
    %c0_64 = arith.constant 0 : index
    %c0_65 = arith.constant 0 : index
    %103 = vector.load %arg5[%c0_64, %c0_65] : memref<16x64xf32, #tpu.memory_space<vmem>>, vector<16x64xf32>
    %104 = arith.mulf %101, %101 : vector<16x1xf32>
    %105 = vector.broadcast %104 : vector<16x1xf32> to vector<16x64xf32>
    %106 = vector.broadcast %102 : vector<1x64xf32> to vector<16x64xf32>
    %107 = arith.addf %105, %106 : vector<16x64xf32>
    %108 = arith.minimumf %103, %107 : vector<16x64xf32>
    %c0_66 = arith.constant 0 : index
    %c0_67 = arith.constant 0 : index
    %109 = vector.load %arg5[%c0_66, %c0_67] : memref<16x64xf32, #tpu.memory_space<vmem>>, vector<16x64xf32>
    tpu.vector_store %arg5[%c0_66, %c0_67], %108 {strides = array<i32>} : memref<16x64xf32, #tpu.memory_space<vmem>>, vector<16x64xf32>,
    %cst_68 = arith.constant 9.000000e+00 : f32
    %110 = vector.broadcast %cst_68 : f32 to vector<16x1xf32>
    %111 = arith.subf %17, %110 : vector<16x1xf32>
    %c9 = arith.constant 9 : index
    %c0_69 = arith.constant 0 : index
    %112 = vector.load %arg4[%c9, %c0_69] : memref<16x64xf32, #tpu.memory_space<vmem>>, vector<1x64xf32>
    %c0_70 = arith.constant 0 : index
    %c0_71 = arith.constant 0 : index
    %113 = vector.load %arg5[%c0_70, %c0_71] : memref<16x64xf32, #tpu.memory_space<vmem>>, vector<16x64xf32>
    %114 = arith.mulf %111, %111 : vector<16x1xf32>
    %115 = vector.broadcast %114 : vector<16x1xf32> to vector<16x64xf32>
    %116 = vector.broadcast %112 : vector<1x64xf32> to vector<16x64xf32>
    %117 = arith.addf %115, %116 : vector<16x64xf32>
    %118 = arith.minimumf %113, %117 : vector<16x64xf32>
    %c0_72 = arith.constant 0 : index
    %c0_73 = arith.constant 0 : index
    %119 = vector.load %arg5[%c0_72, %c0_73] : memref<16x64xf32, #tpu.memory_space<vmem>>, vector<16x64xf32>
    tpu.vector_store %arg5[%c0_72, %c0_73], %118 {strides = array<i32>} : memref<16x64xf32, #tpu.memory_space<vmem>>, vector<16x64xf32>,
    %cst_74 = arith.constant 1.000000e+01 : f32
    %120 = vector.broadcast %cst_74 : f32 to vector<16x1xf32>
    %121 = arith.subf %17, %120 : vector<16x1xf32>
    %c10 = arith.constant 10 : index
    %c0_75 = arith.constant 0 : index
    %122 = vector.load %arg4[%c10, %c0_75] : memref<16x64xf32, #tpu.memory_space<vmem>>, vector<1x64xf32>
    %c0_76 = arith.constant 0 : index
    %c0_77 = arith.constant 0 : index
    %123 = vector.load %arg5[%c0_76, %c0_77] : memref<16x64xf32, #tpu.memory_space<vmem>>, vector<16x64xf32>
    %124 = arith.mulf %121, %121 : vector<16x1xf32>
    %125 = vector.broadcast %124 : vector<16x1xf32> to vector<16x64xf32>
    %126 = vector.broadcast %122 : vector<1x64xf32> to vector<16x64xf32>
    %127 = arith.addf %125, %126 : vector<16x64xf32>
    %128 = arith.minimumf %123, %127 : vector<16x64xf32>
    %c0_78 = arith.constant 0 : index
    %c0_79 = arith.constant 0 : index
    %129 = vector.load %arg5[%c0_78, %c0_79] : memref<16x64xf32, #tpu.memory_space<vmem>>, vector<16x64xf32>
    tpu.vector_store %arg5[%c0_78, %c0_79], %128 {strides = array<i32>} : memref<16x64xf32, #tpu.memory_space<vmem>>, vector<16x64xf32>,
    %cst_80 = arith.constant 1.100000e+01 : f32
    %130 = vector.broadcast %cst_80 : f32 to vector<16x1xf32>
    %131 = arith.subf %17, %130 : vector<16x1xf32>
    %c11 = arith.constant 11 : index
    %c0_81 = arith.constant 0 : index
    %132 = vector.load %arg4[%c11, %c0_81] : memref<16x64xf32, #tpu.memory_space<vmem>>, vector<1x64xf32>
    %c0_82 = arith.constant 0 : index
    %c0_83 = arith.constant 0 : index
    %133 = vector.load %arg5[%c0_82, %c0_83] : memref<16x64xf32, #tpu.memory_space<vmem>>, vector<16x64xf32>
    %134 = arith.mulf %131, %131 : vector<16x1xf32>
    %135 = vector.broadcast %134 : vector<16x1xf32> to vector<16x64xf32>
    %136 = vector.broadcast %132 : vector<1x64xf32> to vector<16x64xf32>
    %137 = arith.addf %135, %136 : vector<16x64xf32>
    %138 = arith.minimumf %133, %137 : vector<16x64xf32>
    %c0_84 = arith.constant 0 : index
    %c0_85 = arith.constant 0 : index
    %139 = vector.load %arg5[%c0_84, %c0_85] : memref<16x64xf32, #tpu.memory_space<vmem>>, vector<16x64xf32>
    tpu.vector_store %arg5[%c0_84, %c0_85], %138 {strides = array<i32>} : memref<16x64xf32, #tpu.memory_space<vmem>>, vector<16x64xf32>,
    %cst_86 = arith.constant 1.200000e+01 : f32
    %140 = vector.broadcast %cst_86 : f32 to vector<16x1xf32>
    %141 = arith.subf %17, %140 : vector<16x1xf32>
    %c12 = arith.constant 12 : index
    %c0_87 = arith.constant 0 : index
    %142 = vector.load %arg4[%c12, %c0_87] : memref<16x64xf32, #tpu.memory_space<vmem>>, vector<1x64xf32>
    %c0_88 = arith.constant 0 : index
    %c0_89 = arith.constant 0 : index
    %143 = vector.load %arg5[%c0_88, %c0_89] : memref<16x64xf32, #tpu.memory_space<vmem>>, vector<16x64xf32>
    %144 = arith.mulf %141, %141 : vector<16x1xf32>
    %145 = vector.broadcast %144 : vector<16x1xf32> to vector<16x64xf32>
    %146 = vector.broadcast %142 : vector<1x64xf32> to vector<16x64xf32>
    %147 = arith.addf %145, %146 : vector<16x64xf32>
    %148 = arith.minimumf %143, %147 : vector<16x64xf32>
    %c0_90 = arith.constant 0 : index
    %c0_91 = arith.constant 0 : index
    %149 = vector.load %arg5[%c0_90, %c0_91] : memref<16x64xf32, #tpu.memory_space<vmem>>, vector<16x64xf32>
    tpu.vector_store %arg5[%c0_90, %c0_91], %148 {strides = array<i32>} : memref<16x64xf32, #tpu.memory_space<vmem>>, vector<16x64xf32>,
    %cst_92 = arith.constant 1.300000e+01 : f32
    %150 = vector.broadcast %cst_92 : f32 to vector<16x1xf32>
    %151 = arith.subf %17, %150 : vector<16x1xf32>
    %c13 = arith.constant 13 : index
    %c0_93 = arith.constant 0 : index
    %152 = vector.load %arg4[%c13, %c0_93] : memref<16x64xf32, #tpu.memory_space<vmem>>, vector<1x64xf32>
    %c0_94 = arith.constant 0 : index
    %c0_95 = arith.constant 0 : index
    %153 = vector.load %arg5[%c0_94, %c0_95] : memref<16x64xf32, #tpu.memory_space<vmem>>, vector<16x64xf32>
    %154 = arith.mulf %151, %151 : vector<16x1xf32>
    %155 = vector.broadcast %154 : vector<16x1xf32> to vector<16x64xf32>
    %156 = vector.broadcast %152 : vector<1x64xf32> to vector<16x64xf32>
    %157 = arith.addf %155, %156 : vector<16x64xf32>
    %158 = arith.minimumf %153, %157 : vector<16x64xf32>
    %c0_96 = arith.constant 0 : index
    %c0_97 = arith.constant 0 : index
    %159 = vector.load %arg5[%c0_96, %c0_97] : memref<16x64xf32, #tpu.memory_space<vmem>>, vector<16x64xf32>
    tpu.vector_store %arg5[%c0_96, %c0_97], %158 {strides = array<i32>} : memref<16x64xf32, #tpu.memory_space<vmem>>, vector<16x64xf32>,
    %cst_98 = arith.constant 1.400000e+01 : f32
    %160 = vector.broadcast %cst_98 : f32 to vector<16x1xf32>
    %161 = arith.subf %17, %160 : vector<16x1xf32>
    %c14 = arith.constant 14 : index
    %c0_99 = arith.constant 0 : index
    %162 = vector.load %arg4[%c14, %c0_99] : memref<16x64xf32, #tpu.memory_space<vmem>>, vector<1x64xf32>
    %c0_100 = arith.constant 0 : index
    %c0_101 = arith.constant 0 : index
    %163 = vector.load %arg5[%c0_100, %c0_101] : memref<16x64xf32, #tpu.memory_space<vmem>>, vector<16x64xf32>
    %164 = arith.mulf %161, %161 : vector<16x1xf32>
    %165 = vector.broadcast %164 : vector<16x1xf32> to vector<16x64xf32>
    %166 = vector.broadcast %162 : vector<1x64xf32> to vector<16x64xf32>
    %167 = arith.addf %165, %166 : vector<16x64xf32>
    %168 = arith.minimumf %163, %167 : vector<16x64xf32>
    %c0_102 = arith.constant 0 : index
    %c0_103 = arith.constant 0 : index
    %169 = vector.load %arg5[%c0_102, %c0_103] : memref<16x64xf32, #tpu.memory_space<vmem>>, vector<16x64xf32>
    tpu.vector_store %arg5[%c0_102, %c0_103], %168 {strides = array<i32>} : memref<16x64xf32, #tpu.memory_space<vmem>>, vector<16x64xf32>,
    %cst_104 = arith.constant 1.500000e+01 : f32
    %170 = vector.broadcast %cst_104 : f32 to vector<16x1xf32>
    %171 = arith.subf %17, %170 : vector<16x1xf32>
    %c15 = arith.constant 15 : index
    %c0_105 = arith.constant 0 : index
    %172 = vector.load %arg4[%c15, %c0_105] : memref<16x64xf32, #tpu.memory_space<vmem>>, vector<1x64xf32>
    %c0_106 = arith.constant 0 : index
    %c0_107 = arith.constant 0 : index
    %173 = vector.load %arg5[%c0_106, %c0_107] : memref<16x64xf32, #tpu.memory_space<vmem>>, vector<16x64xf32>
    %174 = arith.mulf %171, %171 : vector<16x1xf32>
    %175 = vector.broadcast %174 : vector<16x1xf32> to vector<16x64xf32>
    %176 = vector.broadcast %172 : vector<1x64xf32> to vector<16x64xf32>
    %177 = arith.addf %175, %176 : vector<16x64xf32>
    %178 = arith.minimumf %173, %177 : vector<16x64xf32>
    %c0_108 = arith.constant 0 : index
    %c0_109 = arith.constant 0 : index
    %179 = vector.load %arg5[%c0_108, %c0_109] : memref<16x64xf32, #tpu.memory_space<vmem>>, vector<16x64xf32>
    tpu.vector_store %arg5[%c0_108, %c0_109], %178 {strides = array<i32>} : memref<16x64xf32, #tpu.memory_space<vmem>>, vector<16x64xf32>,
    %c0_110 = arith.constant 0 : index
    %c0_111 = arith.constant 0 : index
    %180 = vector.load %arg5[%c0_110, %c0_111] : memref<16x64xf32, #tpu.memory_space<vmem>>, vector<16x64xf32>
    %181 = tpu.transpose %180, [1, 0] : vector<16x64xf32> -> vector<64x16xf32>
    %182 = vector.extract_strided_slice %181 {offsets = [0, 0], sizes = [16, 16], strides = [1, 1]} : vector<64x16xf32> to vector<16x16xf32>
    %183 = vector.extract_strided_slice %181 {offsets = [16, 0], sizes = [16, 16], strides = [1, 1]} : vector<64x16xf32> to vector<16x16xf32>
    %184 = vector.extract_strided_slice %181 {offsets = [32, 0], sizes = [16, 16], strides = [1, 1]} : vector<64x16xf32> to vector<16x16xf32>
    %185 = vector.extract_strided_slice %181 {offsets = [48, 0], sizes = [16, 16], strides = [1, 1]} : vector<64x16xf32> to vector<16x16xf32>
    %186 = tpu.concatenate %182, %183, %184, %185 in 1 : vector<16x16xf32>, vector<16x16xf32>, vector<16x16xf32>, vector<16x16xf32> -> vector<16x64xf32>
    %c0_112 = arith.constant 0 : index
    %c0_113 = arith.constant 0 : index
    %187 = vector.load %arg6[%c0_112, %c0_113] : memref<16x64xf32, #tpu.memory_space<vmem>>, vector<16x64xf32>
    tpu.vector_store %arg6[%c0_112, %c0_113], %186 {strides = array<i32>} : memref<16x64xf32, #tpu.memory_space<vmem>>, vector<16x64xf32>,
    %188 = tpu.iota {dimensions = array<i32: 0>} : vector<16x1xi32>
    %189 = arith.sitofp %188 : vector<16x1xi32> to vector<16x1xf32>
    %cst_114 = arith.constant 1.000000e+30 : f32
    %190 = vector.broadcast %cst_114 : f32 to vector<16x64xf32>
    %c0_115 = arith.constant 0 : index
    %c0_116 = arith.constant 0 : index
    %191 = vector.load %arg7[%c0_115, %c0_116] : memref<16x64xf32, #tpu.memory_space<vmem>>, vector<16x64xf32>
    tpu.vector_store %arg7[%c0_115, %c0_116], %190 {strides = array<i32>} : memref<16x64xf32, #tpu.memory_space<vmem>>, vector<16x64xf32>,
    %cst_117 = arith.constant 0.000000e+00 : f32
    %192 = vector.broadcast %cst_117 : f32 to vector<16x1xf32>
    %193 = arith.subf %189, %192 : vector<16x1xf32>
    %c0_118 = arith.constant 0 : index
    %c0_119 = arith.constant 0 : index
    %194 = vector.load %arg6[%c0_118, %c0_119] : memref<16x64xf32, #tpu.memory_space<vmem>>, vector<1x64xf32>
    %c0_120 = arith.constant 0 : index
    %c0_121 = arith.constant 0 : index
    %195 = vector.load %arg7[%c0_120, %c0_121] : memref<16x64xf32, #tpu.memory_space<vmem>>, vector<16x64xf32>
    %196 = arith.mulf %193, %193 : vector<16x1xf32>
    %197 = vector.broadcast %196 : vector<16x1xf32> to vector<16x64xf32>
    %198 = vector.broadcast %194 : vector<1x64xf32> to vector<16x64xf32>
    %199 = arith.addf %197, %198 : vector<16x64xf32>
    %200 = arith.minimumf %195, %199 : vector<16x64xf32>
    %c0_122 = arith.constant 0 : index
    %c0_123 = arith.constant 0 : index
    %201 = vector.load %arg7[%c0_122, %c0_123] : memref<16x64xf32, #tpu.memory_space<vmem>>, vector<16x64xf32>
    tpu.vector_store %arg7[%c0_122, %c0_123], %200 {strides = array<i32>} : memref<16x64xf32, #tpu.memory_space<vmem>>, vector<16x64xf32>,
    %cst_124 = arith.constant 1.000000e+00 : f32
    %202 = vector.broadcast %cst_124 : f32 to vector<16x1xf32>
    %203 = arith.subf %189, %202 : vector<16x1xf32>
    %c1_125 = arith.constant 1 : index
    %c0_126 = arith.constant 0 : index
    %204 = vector.load %arg6[%c1_125, %c0_126] : memref<16x64xf32, #tpu.memory_space<vmem>>, vector<1x64xf32>
    %c0_127 = arith.constant 0 : index
    %c0_128 = arith.constant 0 : index
    %205 = vector.load %arg7[%c0_127, %c0_128] : memref<16x64xf32, #tpu.memory_space<vmem>>, vector<16x64xf32>
    %206 = arith.mulf %203, %203 : vector<16x1xf32>
    %207 = vector.broadcast %206 : vector<16x1xf32> to vector<16x64xf32>
    %208 = vector.broadcast %204 : vector<1x64xf32> to vector<16x64xf32>
    %209 = arith.addf %207, %208 : vector<16x64xf32>
    %210 = arith.minimumf %205, %209 : vector<16x64xf32>
    %c0_129 = arith.constant 0 : index
    %c0_130 = arith.constant 0 : index
    %211 = vector.load %arg7[%c0_129, %c0_130] : memref<16x64xf32, #tpu.memory_space<vmem>>, vector<16x64xf32>
    tpu.vector_store %arg7[%c0_129, %c0_130], %210 {strides = array<i32>} : memref<16x64xf32, #tpu.memory_space<vmem>>, vector<16x64xf32>,
    %cst_131 = arith.constant 2.000000e+00 : f32
    %212 = vector.broadcast %cst_131 : f32 to vector<16x1xf32>
    %213 = arith.subf %189, %212 : vector<16x1xf32>
    %c2_132 = arith.constant 2 : index
    %c0_133 = arith.constant 0 : index
    %214 = vector.load %arg6[%c2_132, %c0_133] : memref<16x64xf32, #tpu.memory_space<vmem>>, vector<1x64xf32>
    %c0_134 = arith.constant 0 : index
    %c0_135 = arith.constant 0 : index
    %215 = vector.load %arg7[%c0_134, %c0_135] : memref<16x64xf32, #tpu.memory_space<vmem>>, vector<16x64xf32>
    %216 = arith.mulf %213, %213 : vector<16x1xf32>
    %217 = vector.broadcast %216 : vector<16x1xf32> to vector<16x64xf32>
    %218 = vector.broadcast %214 : vector<1x64xf32> to vector<16x64xf32>
    %219 = arith.addf %217, %218 : vector<16x64xf32>
    %220 = arith.minimumf %215, %219 : vector<16x64xf32>
    %c0_136 = arith.constant 0 : index
    %c0_137 = arith.constant 0 : index
    %221 = vector.load %arg7[%c0_136, %c0_137] : memref<16x64xf32, #tpu.memory_space<vmem>>, vector<16x64xf32>
    tpu.vector_store %arg7[%c0_136, %c0_137], %220 {strides = array<i32>} : memref<16x64xf32, #tpu.memory_space<vmem>>, vector<16x64xf32>,
    %cst_138 = arith.constant 3.000000e+00 : f32
    %222 = vector.broadcast %cst_138 : f32 to vector<16x1xf32>
    %223 = arith.subf %189, %222 : vector<16x1xf32>
    %c3_139 = arith.constant 3 : index
    %c0_140 = arith.constant 0 : index
    %224 = vector.load %arg6[%c3_139, %c0_140] : memref<16x64xf32, #tpu.memory_space<vmem>>, vector<1x64xf32>
    %c0_141 = arith.constant 0 : index
    %c0_142 = arith.constant 0 : index
    %225 = vector.load %arg7[%c0_141, %c0_142] : memref<16x64xf32, #tpu.memory_space<vmem>>, vector<16x64xf32>
    %226 = arith.mulf %223, %223 : vector<16x1xf32>
    %227 = vector.broadcast %226 : vector<16x1xf32> to vector<16x64xf32>
    %228 = vector.broadcast %224 : vector<1x64xf32> to vector<16x64xf32>
    %229 = arith.addf %227, %228 : vector<16x64xf32>
    %230 = arith.minimumf %225, %229 : vector<16x64xf32>
    %c0_143 = arith.constant 0 : index
    %c0_144 = arith.constant 0 : index
    %231 = vector.load %arg7[%c0_143, %c0_144] : memref<16x64xf32, #tpu.memory_space<vmem>>, vector<16x64xf32>
    tpu.vector_store %arg7[%c0_143, %c0_144], %230 {strides = array<i32>} : memref<16x64xf32, #tpu.memory_space<vmem>>, vector<16x64xf32>,
    %cst_145 = arith.constant 4.000000e+00 : f32
    %232 = vector.broadcast %cst_145 : f32 to vector<16x1xf32>
    %233 = arith.subf %189, %232 : vector<16x1xf32>
    %c4_146 = arith.constant 4 : index
    %c0_147 = arith.constant 0 : index
    %234 = vector.load %arg6[%c4_146, %c0_147] : memref<16x64xf32, #tpu.memory_space<vmem>>, vector<1x64xf32>
    %c0_148 = arith.constant 0 : index
    %c0_149 = arith.constant 0 : index
    %235 = vector.load %arg7[%c0_148, %c0_149] : memref<16x64xf32, #tpu.memory_space<vmem>>, vector<16x64xf32>
    %236 = arith.mulf %233, %233 : vector<16x1xf32>
    %237 = vector.broadcast %236 : vector<16x1xf32> to vector<16x64xf32>
    %238 = vector.broadcast %234 : vector<1x64xf32> to vector<16x64xf32>
    %239 = arith.addf %237, %238 : vector<16x64xf32>
    %240 = arith.minimumf %235, %239 : vector<16x64xf32>
    %c0_150 = arith.constant 0 : index
    %c0_151 = arith.constant 0 : index
    %241 = vector.load %arg7[%c0_150, %c0_151] : memref<16x64xf32, #tpu.memory_space<vmem>>, vector<16x64xf32>
    tpu.vector_store %arg7[%c0_150, %c0_151], %240 {strides = array<i32>} : memref<16x64xf32, #tpu.memory_space<vmem>>, vector<16x64xf32>,
    %cst_152 = arith.constant 5.000000e+00 : f32
    %242 = vector.broadcast %cst_152 : f32 to vector<16x1xf32>
    %243 = arith.subf %189, %242 : vector<16x1xf32>
    %c5_153 = arith.constant 5 : index
    %c0_154 = arith.constant 0 : index
    %244 = vector.load %arg6[%c5_153, %c0_154] : memref<16x64xf32, #tpu.memory_space<vmem>>, vector<1x64xf32>
    %c0_155 = arith.constant 0 : index
    %c0_156 = arith.constant 0 : index
    %245 = vector.load %arg7[%c0_155, %c0_156] : memref<16x64xf32, #tpu.memory_space<vmem>>, vector<16x64xf32>
    %246 = arith.mulf %243, %243 : vector<16x1xf32>
    %247 = vector.broadcast %246 : vector<16x1xf32> to vector<16x64xf32>
    %248 = vector.broadcast %244 : vector<1x64xf32> to vector<16x64xf32>
    %249 = arith.addf %247, %248 : vector<16x64xf32>
    %250 = arith.minimumf %245, %249 : vector<16x64xf32>
    %c0_157 = arith.constant 0 : index
    %c0_158 = arith.constant 0 : index
    %251 = vector.load %arg7[%c0_157, %c0_158] : memref<16x64xf32, #tpu.memory_space<vmem>>, vector<16x64xf32>
    tpu.vector_store %arg7[%c0_157, %c0_158], %250 {strides = array<i32>} : memref<16x64xf32, #tpu.memory_space<vmem>>, vector<16x64xf32>,
    %cst_159 = arith.constant 6.000000e+00 : f32
    %252 = vector.broadcast %cst_159 : f32 to vector<16x1xf32>
    %253 = arith.subf %189, %252 : vector<16x1xf32>
    %c6_160 = arith.constant 6 : index
    %c0_161 = arith.constant 0 : index
    %254 = vector.load %arg6[%c6_160, %c0_161] : memref<16x64xf32, #tpu.memory_space<vmem>>, vector<1x64xf32>
    %c0_162 = arith.constant 0 : index
    %c0_163 = arith.constant 0 : index
    %255 = vector.load %arg7[%c0_162, %c0_163] : memref<16x64xf32, #tpu.memory_space<vmem>>, vector<16x64xf32>
    %256 = arith.mulf %253, %253 : vector<16x1xf32>
    %257 = vector.broadcast %256 : vector<16x1xf32> to vector<16x64xf32>
    %258 = vector.broadcast %254 : vector<1x64xf32> to vector<16x64xf32>
    %259 = arith.addf %257, %258 : vector<16x64xf32>
    %260 = arith.minimumf %255, %259 : vector<16x64xf32>
    %c0_164 = arith.constant 0 : index
    %c0_165 = arith.constant 0 : index
    %261 = vector.load %arg7[%c0_164, %c0_165] : memref<16x64xf32, #tpu.memory_space<vmem>>, vector<16x64xf32>
    tpu.vector_store %arg7[%c0_164, %c0_165], %260 {strides = array<i32>} : memref<16x64xf32, #tpu.memory_space<vmem>>, vector<16x64xf32>,
    %cst_166 = arith.constant 7.000000e+00 : f32
    %262 = vector.broadcast %cst_166 : f32 to vector<16x1xf32>
    %263 = arith.subf %189, %262 : vector<16x1xf32>
    %c7_167 = arith.constant 7 : index
    %c0_168 = arith.constant 0 : index
    %264 = vector.load %arg6[%c7_167, %c0_168] : memref<16x64xf32, #tpu.memory_space<vmem>>, vector<1x64xf32>
    %c0_169 = arith.constant 0 : index
    %c0_170 = arith.constant 0 : index
    %265 = vector.load %arg7[%c0_169, %c0_170] : memref<16x64xf32, #tpu.memory_space<vmem>>, vector<16x64xf32>
    %266 = arith.mulf %263, %263 : vector<16x1xf32>
    %267 = vector.broadcast %266 : vector<16x1xf32> to vector<16x64xf32>
    %268 = vector.broadcast %264 : vector<1x64xf32> to vector<16x64xf32>
    %269 = arith.addf %267, %268 : vector<16x64xf32>
    %270 = arith.minimumf %265, %269 : vector<16x64xf32>
    %c0_171 = arith.constant 0 : index
    %c0_172 = arith.constant 0 : index
    %271 = vector.load %arg7[%c0_171, %c0_172] : memref<16x64xf32, #tpu.memory_space<vmem>>, vector<16x64xf32>
    tpu.vector_store %arg7[%c0_171, %c0_172], %270 {strides = array<i32>} : memref<16x64xf32, #tpu.memory_space<vmem>>, vector<16x64xf32>,
    %cst_173 = arith.constant 8.000000e+00 : f32
    %272 = vector.broadcast %cst_173 : f32 to vector<16x1xf32>
    %273 = arith.subf %189, %272 : vector<16x1xf32>
    %c8_174 = arith.constant 8 : index
    %c0_175 = arith.constant 0 : index
    %274 = vector.load %arg6[%c8_174, %c0_175] : memref<16x64xf32, #tpu.memory_space<vmem>>, vector<1x64xf32>
    %c0_176 = arith.constant 0 : index
    %c0_177 = arith.constant 0 : index
    %275 = vector.load %arg7[%c0_176, %c0_177] : memref<16x64xf32, #tpu.memory_space<vmem>>, vector<16x64xf32>
    %276 = arith.mulf %273, %273 : vector<16x1xf32>
    %277 = vector.broadcast %276 : vector<16x1xf32> to vector<16x64xf32>
    %278 = vector.broadcast %274 : vector<1x64xf32> to vector<16x64xf32>
    %279 = arith.addf %277, %278 : vector<16x64xf32>
    %280 = arith.minimumf %275, %279 : vector<16x64xf32>
    %c0_178 = arith.constant 0 : index
    %c0_179 = arith.constant 0 : index
    %281 = vector.load %arg7[%c0_178, %c0_179] : memref<16x64xf32, #tpu.memory_space<vmem>>, vector<16x64xf32>
    tpu.vector_store %arg7[%c0_178, %c0_179], %280 {strides = array<i32>} : memref<16x64xf32, #tpu.memory_space<vmem>>, vector<16x64xf32>,
    %cst_180 = arith.constant 9.000000e+00 : f32
    %282 = vector.broadcast %cst_180 : f32 to vector<16x1xf32>
    %283 = arith.subf %189, %282 : vector<16x1xf32>
    %c9_181 = arith.constant 9 : index
    %c0_182 = arith.constant 0 : index
    %284 = vector.load %arg6[%c9_181, %c0_182] : memref<16x64xf32, #tpu.memory_space<vmem>>, vector<1x64xf32>
    %c0_183 = arith.constant 0 : index
    %c0_184 = arith.constant 0 : index
    %285 = vector.load %arg7[%c0_183, %c0_184] : memref<16x64xf32, #tpu.memory_space<vmem>>, vector<16x64xf32>
    %286 = arith.mulf %283, %283 : vector<16x1xf32>
    %287 = vector.broadcast %286 : vector<16x1xf32> to vector<16x64xf32>
    %288 = vector.broadcast %284 : vector<1x64xf32> to vector<16x64xf32>
    %289 = arith.addf %287, %288 : vector<16x64xf32>
    %290 = arith.minimumf %285, %289 : vector<16x64xf32>
    %c0_185 = arith.constant 0 : index
    %c0_186 = arith.constant 0 : index
    %291 = vector.load %arg7[%c0_185, %c0_186] : memref<16x64xf32, #tpu.memory_space<vmem>>, vector<16x64xf32>
    tpu.vector_store %arg7[%c0_185, %c0_186], %290 {strides = array<i32>} : memref<16x64xf32, #tpu.memory_space<vmem>>, vector<16x64xf32>,
    %cst_187 = arith.constant 1.000000e+01 : f32
    %292 = vector.broadcast %cst_187 : f32 to vector<16x1xf32>
    %293 = arith.subf %189, %292 : vector<16x1xf32>
    %c10_188 = arith.constant 10 : index
    %c0_189 = arith.constant 0 : index
    %294 = vector.load %arg6[%c10_188, %c0_189] : memref<16x64xf32, #tpu.memory_space<vmem>>, vector<1x64xf32>
    %c0_190 = arith.constant 0 : index
    %c0_191 = arith.constant 0 : index
    %295 = vector.load %arg7[%c0_190, %c0_191] : memref<16x64xf32, #tpu.memory_space<vmem>>, vector<16x64xf32>
    %296 = arith.mulf %293, %293 : vector<16x1xf32>
    %297 = vector.broadcast %296 : vector<16x1xf32> to vector<16x64xf32>
    %298 = vector.broadcast %294 : vector<1x64xf32> to vector<16x64xf32>
    %299 = arith.addf %297, %298 : vector<16x64xf32>
    %300 = arith.minimumf %295, %299 : vector<16x64xf32>
    %c0_192 = arith.constant 0 : index
    %c0_193 = arith.constant 0 : index
    %301 = vector.load %arg7[%c0_192, %c0_193] : memref<16x64xf32, #tpu.memory_space<vmem>>, vector<16x64xf32>
    tpu.vector_store %arg7[%c0_192, %c0_193], %300 {strides = array<i32>} : memref<16x64xf32, #tpu.memory_space<vmem>>, vector<16x64xf32>,
    %cst_194 = arith.constant 1.100000e+01 : f32
    %302 = vector.broadcast %cst_194 : f32 to vector<16x1xf32>
    %303 = arith.subf %189, %302 : vector<16x1xf32>
    %c11_195 = arith.constant 11 : index
    %c0_196 = arith.constant 0 : index
    %304 = vector.load %arg6[%c11_195, %c0_196] : memref<16x64xf32, #tpu.memory_space<vmem>>, vector<1x64xf32>
    %c0_197 = arith.constant 0 : index
    %c0_198 = arith.constant 0 : index
    %305 = vector.load %arg7[%c0_197, %c0_198] : memref<16x64xf32, #tpu.memory_space<vmem>>, vector<16x64xf32>
    %306 = arith.mulf %303, %303 : vector<16x1xf32>
    %307 = vector.broadcast %306 : vector<16x1xf32> to vector<16x64xf32>
    %308 = vector.broadcast %304 : vector<1x64xf32> to vector<16x64xf32>
    %309 = arith.addf %307, %308 : vector<16x64xf32>
    %310 = arith.minimumf %305, %309 : vector<16x64xf32>
    %c0_199 = arith.constant 0 : index
    %c0_200 = arith.constant 0 : index
    %311 = vector.load %arg7[%c0_199, %c0_200] : memref<16x64xf32, #tpu.memory_space<vmem>>, vector<16x64xf32>
    tpu.vector_store %arg7[%c0_199, %c0_200], %310 {strides = array<i32>} : memref<16x64xf32, #tpu.memory_space<vmem>>, vector<16x64xf32>,
    %cst_201 = arith.constant 1.200000e+01 : f32
    %312 = vector.broadcast %cst_201 : f32 to vector<16x1xf32>
    %313 = arith.subf %189, %312 : vector<16x1xf32>
    %c12_202 = arith.constant 12 : index
    %c0_203 = arith.constant 0 : index
    %314 = vector.load %arg6[%c12_202, %c0_203] : memref<16x64xf32, #tpu.memory_space<vmem>>, vector<1x64xf32>
    %c0_204 = arith.constant 0 : index
    %c0_205 = arith.constant 0 : index
    %315 = vector.load %arg7[%c0_204, %c0_205] : memref<16x64xf32, #tpu.memory_space<vmem>>, vector<16x64xf32>
    %316 = arith.mulf %313, %313 : vector<16x1xf32>
    %317 = vector.broadcast %316 : vector<16x1xf32> to vector<16x64xf32>
    %318 = vector.broadcast %314 : vector<1x64xf32> to vector<16x64xf32>
    %319 = arith.addf %317, %318 : vector<16x64xf32>
    %320 = arith.minimumf %315, %319 : vector<16x64xf32>
    %c0_206 = arith.constant 0 : index
    %c0_207 = arith.constant 0 : index
    %321 = vector.load %arg7[%c0_206, %c0_207] : memref<16x64xf32, #tpu.memory_space<vmem>>, vector<16x64xf32>
    tpu.vector_store %arg7[%c0_206, %c0_207], %320 {strides = array<i32>} : memref<16x64xf32, #tpu.memory_space<vmem>>, vector<16x64xf32>,
    %cst_208 = arith.constant 1.300000e+01 : f32
    %322 = vector.broadcast %cst_208 : f32 to vector<16x1xf32>
    %323 = arith.subf %189, %322 : vector<16x1xf32>
    %c13_209 = arith.constant 13 : index
    %c0_210 = arith.constant 0 : index
    %324 = vector.load %arg6[%c13_209, %c0_210] : memref<16x64xf32, #tpu.memory_space<vmem>>, vector<1x64xf32>
    %c0_211 = arith.constant 0 : index
    %c0_212 = arith.constant 0 : index
    %325 = vector.load %arg7[%c0_211, %c0_212] : memref<16x64xf32, #tpu.memory_space<vmem>>, vector<16x64xf32>
    %326 = arith.mulf %323, %323 : vector<16x1xf32>
    %327 = vector.broadcast %326 : vector<16x1xf32> to vector<16x64xf32>
    %328 = vector.broadcast %324 : vector<1x64xf32> to vector<16x64xf32>
    %329 = arith.addf %327, %328 : vector<16x64xf32>
    %330 = arith.minimumf %325, %329 : vector<16x64xf32>
    %c0_213 = arith.constant 0 : index
    %c0_214 = arith.constant 0 : index
    %331 = vector.load %arg7[%c0_213, %c0_214] : memref<16x64xf32, #tpu.memory_space<vmem>>, vector<16x64xf32>
    tpu.vector_store %arg7[%c0_213, %c0_214], %330 {strides = array<i32>} : memref<16x64xf32, #tpu.memory_space<vmem>>, vector<16x64xf32>,
    %cst_215 = arith.constant 1.400000e+01 : f32
    %332 = vector.broadcast %cst_215 : f32 to vector<16x1xf32>
    %333 = arith.subf %189, %332 : vector<16x1xf32>
    %c14_216 = arith.constant 14 : index
    %c0_217 = arith.constant 0 : index
    %334 = vector.load %arg6[%c14_216, %c0_217] : memref<16x64xf32, #tpu.memory_space<vmem>>, vector<1x64xf32>
    %c0_218 = arith.constant 0 : index
    %c0_219 = arith.constant 0 : index
    %335 = vector.load %arg7[%c0_218, %c0_219] : memref<16x64xf32, #tpu.memory_space<vmem>>, vector<16x64xf32>
    %336 = arith.mulf %333, %333 : vector<16x1xf32>
    %337 = vector.broadcast %336 : vector<16x1xf32> to vector<16x64xf32>
    %338 = vector.broadcast %334 : vector<1x64xf32> to vector<16x64xf32>
    %339 = arith.addf %337, %338 : vector<16x64xf32>
    %340 = arith.minimumf %335, %339 : vector<16x64xf32>
    %c0_220 = arith.constant 0 : index
    %c0_221 = arith.constant 0 : index
    %341 = vector.load %arg7[%c0_220, %c0_221] : memref<16x64xf32, #tpu.memory_space<vmem>>, vector<16x64xf32>
    tpu.vector_store %arg7[%c0_220, %c0_221], %340 {strides = array<i32>} : memref<16x64xf32, #tpu.memory_space<vmem>>, vector<16x64xf32>,
    %cst_222 = arith.constant 1.500000e+01 : f32
    %342 = vector.broadcast %cst_222 : f32 to vector<16x1xf32>
    %343 = arith.subf %189, %342 : vector<16x1xf32>
    %c15_223 = arith.constant 15 : index
    %c0_224 = arith.constant 0 : index
    %344 = vector.load %arg6[%c15_223, %c0_224] : memref<16x64xf32, #tpu.memory_space<vmem>>, vector<1x64xf32>
    %c0_225 = arith.constant 0 : index
    %c0_226 = arith.constant 0 : index
    %345 = vector.load %arg7[%c0_225, %c0_226] : memref<16x64xf32, #tpu.memory_space<vmem>>, vector<16x64xf32>
    %346 = arith.mulf %343, %343 : vector<16x1xf32>
    %347 = vector.broadcast %346 : vector<16x1xf32> to vector<16x64xf32>
    %348 = vector.broadcast %344 : vector<1x64xf32> to vector<16x64xf32>
    %349 = arith.addf %347, %348 : vector<16x64xf32>
    %350 = arith.minimumf %345, %349 : vector<16x64xf32>
    %c0_227 = arith.constant 0 : index
    %c0_228 = arith.constant 0 : index
    %351 = vector.load %arg7[%c0_227, %c0_228] : memref<16x64xf32, #tpu.memory_space<vmem>>, vector<16x64xf32>
    tpu.vector_store %arg7[%c0_227, %c0_228], %350 {strides = array<i32>} : memref<16x64xf32, #tpu.memory_space<vmem>>, vector<16x64xf32>,
    %c0_229 = arith.constant 0 : index
    %c0_230 = arith.constant 0 : index
    %352 = vector.load %arg7[%c0_229, %c0_230] : memref<16x64xf32, #tpu.memory_space<vmem>>, vector<16x64xf32>
    %cst_231 = arith.constant 1.000000e+29 : f32
    %353 = vector.broadcast %cst_231 : f32 to vector<16x64xf32>
    %354 = arith.cmpf olt, %352, %353 : vector<16x64xf32>
    %cst_232 = arith.constant 0.000000e+00 : f32
    %355 = vector.broadcast %cst_232 : f32 to vector<16x64xf32>
    %356 = arith.select %354, %352, %355 : vector<16x64xi1>, vector<16x64xf32>
    %357 = arith.subf %1, %3 : vector<16x16xf32>
    %358 = arith.mulf %357, %357 : vector<16x16xf32>
    %359 = tpu.transpose %358, [1, 0] : vector<16x16xf32> -> vector<16x16xf32>
    %360 = tpu.concatenate %359, %359, %359, %359 in 1 : vector<16x16xf32>, vector<16x16xf32>, vector<16x16xf32>, vector<16x16xf32> -> vector<16x64xf32>
    %361 = arith.mulf %360, %356 : vector<16x64xf32>
    %362 = vector.shape_cast %361 : vector<16x64xf32> to vector<1x16x64xf32>
    %cst_233 = arith.constant dense<0.000000e+00> : vector<1xf32>
    %363 = vector.multi_reduction <add>, %362, %cst_233 [1, 2] : vector<1x16x64xf32> to vector<1xf32>
    %364 = vector.shape_cast %363 : vector<1xf32> to vector<1x1x1xf32>
    %365 = vector.extract %364[0, 0, 0] : f32 from vector<1x1x1xf32>
    %366 = vector.broadcast %365 : f32 to vector<1x1x128xf32>
    %c0_234 = arith.constant 0 : index
    %c0_235 = arith.constant 0 : index
    %c0_236 = arith.constant 0 : index
    %367 = vector.load %arg3[%c0_234, %c0_235, %c0_236] : memref<1x1x128xf32, #tpu.memory_space<vmem>>, vector<1x1x128xf32>
    tpu.vector_store %arg3[%c0_234, %c0_235, %c0_236], %366 {strides = array<i32>} : memref<1x1x128xf32, #tpu.memory_space<vmem>>, vector<1x1x128xf32>,
    return
  }
  func.func @transform_0(%arg0: i32) -> (i32, i32, i32) {
    %c0_i32 = arith.constant 0 : i32
    %c0_i32_0 = arith.constant 0 : i32
    %c0_i32_1 = arith.constant 0 : i32
    return %arg0, %c0_i32, %c0_i32_0 : i32, i32, i32
  }
  func.func @transform_1(%arg0: i32) -> (i32, i32, i32) {
    %c0_i32 = arith.constant 0 : i32
    %c0_i32_0 = arith.constant 0 : i32
    %c0_i32_1 = arith.constant 0 : i32
    return %arg0, %c0_i32, %c0_i32_0 : i32, i32, i32
  }
  func.func @transform_2(%arg0: i32) -> (i32, i32, i32) {
    %c0_i32 = arith.constant 0 : i32
    %c0_i32_0 = arith.constant 0 : i32
    %c0_i32_1 = arith.constant 0 : i32
    return %arg0, %c0_i32, %c0_i32_0 : i32, i32, i32
  }
}

</mosaic_0001>

<llo_original>
// kernel: tpu_custom_call.1
$region0: #{tpu_custom_call.1}
  #allocation0 [shape = 'u32[]', space=smem, size = 0x4, offset = 0x4, fixed_abs, tag = 'smem constant byte address 0x4 - core index']
  #allocation1 [shape = 'u32[72,128]{1,0:T(1,128)}', space=vmem, size = 0x9000, scoped, tag = 'internal scratch']
  #allocation2 [shape = 'f32[16,64]{1,0:T(8,128)}', space=vmem, size = 0x2000, scoped, tag = 'scratch operand']
  #allocation3 [shape = 'f32[16,64]{1,0:T(8,128)}', space=vmem, size = 0x2000, scoped, tag = 'scratch operand']
  #allocation4 [shape = 'f32[16,64]{1,0:T(8,128)}', space=vmem, size = 0x2000, scoped, tag = 'scratch operand']
  #allocation5 [shape = 'f32[16,64]{1,0:T(8,128)}', space=vmem, size = 0x2000, scoped, tag = 'scratch operand']
  %s0 = inlined_call_operand.hbm [shape: f32[2,16,16], index: 0, kind: input, shape index: {}]
  %s1 = inlined_call_operand.hbm [shape: f32[2,16,16], index: 1, kind: input, shape index: {}]
  %s2 = inlined_call_operand.hbm [shape: f32[2,1,128], index: 2, kind: output, shape index: {}]
  %s3 = sld [smem:[#allocation0]]
  $region49: #{tpu_custom_call.1} parent=0
    _
  %s5 = ssub.s32 1, %s3
  %s6 = scalar_select 0, %s5, %s3
  $region1: #{tpu_custom_call.1} parent=0
    #allocation6 [shape = 'u8[16384]{0}', space=vmem, size = 0x4000, scoped, tag = 'input window, operand 0']
    #allocation7 [shape = 's32[2]{0}', space=sflag, size = 0x8, scoped, tag = 'scoped memory for tpu_custom_call.1']
    #allocation8 [shape = 's32[2]{0}', space=sflag, size = 0x8, scoped, tag = 'scoped memory for tpu_custom_call.1']
    #allocation9 [shape = 'u8[16384]{0}', space=vmem, size = 0x4000, scoped, tag = 'input window, operand 1']
    #allocation10 [shape = 's32[2]{0}', space=sflag, size = 0x8, scoped, tag = 'scoped memory for tpu_custom_call.1']
    #allocation11 [shape = 'u8[1024]{0}', space=vmem, size = 0x400, scoped, tag = 'output window, operand 0']
    %7 = vsyncpa [#allocation7], 0
    %s8 = scalar_lea.sflag [#allocation7], 1
    %9 = vsyncpa %s8, 0
    %10 = vsyncpa [#allocation10], 0
    %s11 = scalar_lea.sflag [#allocation10], 1
    %12 = vsyncpa %s11, 0
    %13 = vsyncpa [#allocation8], 0
    %s14 = scalar_lea.sflag [#allocation8], 1
    %15 = vsyncpa %s14, 0
    loop: start=0, step=1, limit=4
    $region2: #{tpu_custom_call.1} parent=1 // loop_pre_header
      _
    $region3: #{tpu_custom_call.1} parent=1 // loop_header
      %s17 = sphi 0, %s21
      %p18 = scmp.ge.s32.totalorder %s17, 4
      %s27 = sphi 0, %s29
      %s30 = sphi 0, %s27
      %s31 = sphi 0, %s30
      %s47 = sphi 0, %s31
      %s53 = sphi 0, %s55
      %s56 = sphi 0, %s53
      %s57 = sphi 0, %s56
      %s73 = sphi 0, %s57
      %s79 = sphi 0, %s81
      %s82 = sphi 0, %s79
      %s83 = sphi 0, %s82
      %s99 = sphi 0, %s83
    $region4: #{tpu_custom_call.1} parent=1 // loop_header_branch
      %20 = sbr.rel (%p18) target = $region8
    $region5: #{tpu_custom_call.1} parent=1 // loop_body
      %s22 = ssub.s32 %s17, 1
      %s23 = ssub.s32 %s17, 2
      %s24 = sadd.s32 %s17, 1
      %s25 = ssub.s32 %s17, %s24
      %p26 = scmp.eq.s32.totalorder %s25, 0
      %s28 = sadd.s32 %s27, 1
      %s29 = scalar_select %p26, %s27, %s28
      %p32 = pneg %p26
      %p33 = scmp.eq.s32.totalorder %s17, 1
      %p34 = por %p32, %p33
      %p35 = scmp.ne.s32.totalorder %s27, %s30
      %p36 = scmp.eq.s32.totalorder %s17, 0
      %p37 = por %p35, %p36
      %p38 = scmp.ne.s32.totalorder %s27, %s30
      %p39 = scmp.eq.s32.totalorder %s22, 1
      %p40 = por %p38, %p39
      %p41 = scmp.ne.s32.totalorder %s30, %s31
      %p42 = scmp.eq.s32.totalorder %s22, 0
      %p43 = por %p41, %p42
      %p44 = scmp.ne.s32.totalorder %s30, %s31
      %p45 = scmp.eq.s32.totalorder %s23, 1
      %p46 = por %p44, %p45
      %p48 = scmp.ne.s32.totalorder %s31, %s47
      %p49 = scmp.eq.s32.totalorder %s23, 0
      %p50 = por %p48, %p49
      %s51 = ssub.s32 %s17, %s24
      %p52 = scmp.eq.s32.totalorder %s51, 0
      %s54 = sadd.s32 %s53, 1
      %s55 = scalar_select %p52, %s53, %s54
      %p58 = pneg %p52
      %p59 = scmp.eq.s32.totalorder %s17, 1
      %p60 = por %p58, %p59
      %p61 = scmp.ne.s32.totalorder %s53, %s56
      %p62 = scmp.eq.s32.totalorder %s17, 0
      %p63 = por %p61, %p62
      %p64 = scmp.ne.s32.totalorder %s53, %s56
      %p65 = scmp.eq.s32.totalorder %s22, 1
      %p66 = por %p64, %p65
      %p67 = scmp.ne.s32.totalorder %s56, %s57
      %p68 = scmp.eq.s32.totalorder %s22, 0
      %p69 = por %p67, %p68
      %p70 = scmp.ne.s32.totalorder %s56, %s57
      %p71 = scmp.eq.s32.totalorder %s23, 1
      %p72 = por %p70, %p71
      %p74 = scmp.ne.s32.totalorder %s57, %s73
      %p75 = scmp.eq.s32.totalorder %s23, 0
      %p76 = por %p74, %p75
      %s77 = ssub.s32 %s17, %s24
      %p78 = scmp.eq.s32.totalorder %s77, 0
      %s80 = sadd.s32 %s79, 1
      %s81 = scalar_select %p78, %s79, %s80
      %p84 = pneg %p78
      %p85 = scmp.eq.s32.totalorder %s17, 1
      %p86 = por %p84, %p85
      %p87 = scmp.ne.s32.totalorder %s79, %s82
      %p88 = scmp.eq.s32.totalorder %s17, 0
      %p89 = por %p87, %p88
      %p90 = scmp.ne.s32.totalorder %s79, %s82
      %p91 = scmp.eq.s32.totalorder %s22, 1
      %p92 = por %p90, %p91
      %p93 = scmp.ne.s32.totalorder %s82, %s83
      %p94 = scmp.eq.s32.totalorder %s22, 0
      %p95 = por %p93, %p94
      %p96 = scmp.ne.s32.totalorder %s82, %s83
      %p97 = scmp.eq.s32.totalorder %s23, 1
      %p98 = por %p96, %p97
      %p100 = scmp.ne.s32.totalorder %s83, %s99
      %p101 = scmp.eq.s32.totalorder %s23, 0
      %p102 = por %p100, %p101
      %p103 = scmp.le.s32.totalorder 1, %s17
      %p104 = scmp.lt.s32.totalorder %s17, 3
      %p105 = pnand %p103, %p104
      %p106 = pneg %p105
      // Predicated region
      $region9: #{tpu_custom_call.1} parent=5 // pred_check
        _
      $region10: #{tpu_custom_call.1} parent=5 // pred_check_branch
        %108 = sbr.rel (%p105) target = $region12
      $region11: #{tpu_custom_call.1} parent=5 // pred_region
        %s109 = ssub.s32 %s17, 1
      $region12: #{tpu_custom_call.1} parent=5 // pred_fallthru
        _
      %p110 = scmp.lt.s32.totalorder %s17, 2
      // Predicated region
      $region13: #{tpu_custom_call.1} parent=5 // pred_check
        %p111 = pneg %p110
      $region14: #{tpu_custom_call.1} parent=5 // pred_check_branch
        %113 = sbr.rel (%p111) target = $region16
      $region15: #{tpu_custom_call.1} parent=5 // pred_region
        // Predicated region
        $region17: #{tpu_custom_call.1} parent=15 // pred_check
          %p114 = pneg %p37
        $region18: #{tpu_custom_call.1} parent=15 // pred_check_branch
          %116 = sbr.rel (%p114) target = $region20
        $region19: #{tpu_custom_call.1} parent=15 // pred_region
          %s117 = sand.u32 %s27, 1
          %s118 = scalar_lea.sflag [#allocation7], %s117
          %s119 = sand.u32 %s27, 1
          %s120 = smul.addr %s119, 16
          %s121 = scalar_lea.vmem [#allocation6], %s120
          %123 = vsyncadd %s118, 0
          %s124 = smul.addr %s17, 2
          %s125 = smul.addr %s124, 8
          %s126 = scalar_lea.hbm %s0, %s125
          %s127 = sshll.u32 %s126, 4
          %s128 = int_to_ptr.hbm [resolvable:$true] %s127
          %s129 = sshll.u32 %s121, 4
          %s130 = int_to_ptr.vmem [resolvable:$true] %s129
          %135 = dma.hbm_to_vmem [thread:$0]  %s128, 256, %s130, %s118, 128, 128, 8
        $region20: #{tpu_custom_call.1} parent=15 // pred_fallthru
          _
        // Predicated region
        $region21: #{tpu_custom_call.1} parent=15 // pred_check
          %p136 = pneg %p63
        $region22: #{tpu_custom_call.1} parent=15 // pred_check_branch
          %138 = sbr.rel (%p136) target = $region24
        $region23: #{tpu_custom_call.1} parent=15 // pred_region
          %s139 = sand.u32 %s53, 1
          %s140 = scalar_lea.sflag [#allocation10], %s139
          %s141 = sand.u32 %s53, 1
          %s142 = smul.addr %s141, 16
          %s143 = scalar_lea.vmem [#allocation9], %s142
          %145 = vsyncadd %s140, 0
          %s146 = smul.addr %s17, 2
          %s147 = smul.addr %s146, 8
          %s148 = scalar_lea.hbm %s1, %s147
          %s149 = sshll.u32 %s148, 4
          %s150 = int_to_ptr.hbm [resolvable:$true] %s149
          %s151 = sshll.u32 %s143, 4
          %s152 = int_to_ptr.vmem [resolvable:$true] %s151
          %157 = dma.hbm_to_vmem [thread:$0]  %s150, 256, %s152, %s140, 128, 128, 8
        $region24: #{tpu_custom_call.1} parent=15 // pred_fallthru
          _
      $region16: #{tpu_custom_call.1} parent=5 // pred_fallthru
        _
      %p158 = scmp.le.s32.totalorder 1, %s17
      %p159 = scmp.lt.s32.totalorder %s17, 3
      %p160 = pnand %p158, %p159
      %p161 = pneg %p160
      // Predicated region
      $region25: #{tpu_custom_call.1} parent=5 // pred_check
        _
      $region26: #{tpu_custom_call.1} parent=5 // pred_check_branch
        %163 = sbr.rel (%p160) target = $region28
      $region27: #{tpu_custom_call.1} parent=5 // pred_region
        %s164 = ssub.s32 %s17, 1
        %s165 = sand.u32 %s30, 1
        %s166 = scalar_lea.sflag [#allocation7], %s165
        %s167 = sand.u32 %s30, 1
        %s168 = smul.addr %s167, 16
        %s169 = scalar_lea.vmem [#allocation6], %s168
        // Predicated region
        $region29: #{tpu_custom_call.1} parent=27 // pred_check
          %p170 = pneg %p43
        $region30: #{tpu_custom_call.1} parent=27 // pred_check_branch
          %172 = sbr.rel (%p170) target = $region32
        $region31: #{tpu_custom_call.1} parent=27 // pred_region
          %174 = dma.done %s166, 256
        $region32: #{tpu_custom_call.1} parent=27 // pred_fallthru
          _
        %s175 = sand.u32 %s56, 1
        %s176 = scalar_lea.sflag [#allocation10], %s175
        %s177 = sand.u32 %s56, 1
        %s178 = smul.addr %s177, 16
        %s179 = scalar_lea.vmem [#allocation9], %s178
        // Predicated region
        $region33: #{tpu_custom_call.1} parent=27 // pred_check
          %p180 = pneg %p69
        $region34: #{tpu_custom_call.1} parent=27 // pred_check_branch
          %182 = sbr.rel (%p180) target = $region36
        $region35: #{tpu_custom_call.1} parent=27 // pred_region
          %184 = dma.done %s176, 256
        $region36: #{tpu_custom_call.1} parent=27 // pred_fallthru
          _
        %s185 = sand.u32 %s30, 1
        %s186 = scalar_lea.sflag [#allocation7], %s185
        %s187 = sand.u32 %s30, 1
        %s188 = smul.addr %s187, 16
        %s189 = scalar_lea.vmem [#allocation6], %s188
        %p190 = pneg %p43
        %p191 = pneg %p40
        %s192 = sand.u32 %s56, 1
        %s193 = scalar_lea.sflag [#allocation10], %s192
        %s194 = sand.u32 %s56, 1
        %s195 = smul.addr %s194, 16
        %s196 = scalar_lea.vmem [#allocation9], %s195
        %p197 = pneg %p69
        %p198 = pneg %p66
        %p199 = pneg %p95
        %p200 = pneg %p92
        %s201 = sand.u32 %s82, 1
        %s202 = scalar_lea.sflag [#allocation8], %s201
        %s203 = sand.u32 %s82, 1
        %s204 = scalar_lea.vmem [#allocation11], %s203
        %v205 = vld [vmem:[%s169] sm:$0xff]
        %v206 = vld [vmem:[%s169 + $0x8] sm:$0xff]
        %v207 = vld [vmem:[%s179] sm:$0xff]
        %v208 = vld [vmem:[%s179 + $0x8] sm:$0xff]
        %vm209 = vcmp.gt.f32.partialorder %v205, 0.5
        %vm210 = vcmp.gt.f32.partialorder %v206, 0.5
        %vm211 = vcmp.gt.f32.partialorder %v207, 0.5
        %vm212 = vcmp.gt.f32.partialorder %v208, 0.5
        %v213 = vsel %vm209, 0.0, 1e+30
        %v214 = vsel %vm210, 0.0, 1e+30
        %v215 = vsel %vm209, 1e+30, 0.0
        %v216 = vsel %vm210, 1e+30, 0.0
        %v217 = vsel %vm211, 0.0, 1e+30
        %v218 = vsel %vm212, 0.0, 1e+30
        %v219 = vsel %vm211, 1e+30, 0.0
        %v220 = vsel %vm212, 1e+30, 0.0
        %223 = vrot.lane.b32.xlu0 %v215, 16
        %v224 = vpop.permute.xlu0 %223
        %225 = vrot.lane.b32.xlu0 %v216, 16
        %v226 = vpop.permute.xlu0 %225
        %231 = vrot.lane.b32.xlu0 %v217, 32
        %v232 = vpop.permute.xlu0 %231
        %233 = vrot.lane.b32.xlu0 %v218, 32
        %v234 = vpop.permute.xlu0 %233
        %239 = vrot.lane.b32.xlu0 %v219, 48
        %v240 = vpop.permute.xlu0 %239
        %241 = vrot.lane.b32.xlu0 %v220, 48
        %v242 = vpop.permute.xlu0 %241
        %vm245 = vcmask 130048
        %v246 = vsel %vm245, %v213, %v224
        %v247 = vsel %vm245, %v214, %v226
        %vm248 = vcmask 261120
        %v249 = vsel %vm248, %v246, %v232
        %v250 = vsel %vm248, %v247, %v234
        %vm251 = vcmask 392192
        %v252 = vsel %vm251, %v249, %v240
        %v253 = vsel %vm251, %v250, %v242
        %vm254 = vcmask 523264
        %255 = vst.msk [vmem:[#allocation2] sm:$0xff] %vm254, %v252
        %256 = vst.msk [vmem:[#allocation2 + $0x8] sm:$0xff] %vm254, %v253
        %v257 = vlaneseq
        %v258 = vshrl.u32 %v257, 7
        %v259 = vadd.s32 %v258, 8
        %v260 = vcvt.s32.f32 %v258
        %v261 = vcvt.s32.f32 %v259
        %262 = vst.msk [vmem:[#allocation3] sm:$0xff] %vm254, 1e+30
        %263 = vst.msk [vmem:[#allocation3 + $0x8] sm:$0xff] %vm254, 1e+30
        %v264 = vld [vmem:[#allocation2] sm:$0x1]
        %v265 = vld [vmem:[#allocation3] sm:$0xff]
        %v266 = vld [vmem:[#allocation3 + $0x8] sm:$0xff]
        %v267 = vmul.f32 %v260, %v260
        %v268 = vmul.f32 %v261, %v261
        %v269 = vperm.slane %v264, 0
        %v270 = vadd.f32 %v267, %v269
        %v271 = vadd.f32 %v268, %v269
        %v272 = vmin.f32 %v265, %v270
        %v273 = vmin.f32 %v266, %v271
        %274 = vst.msk [vmem:[#allocation3] sm:$0xff] %vm254, %v272
        %275 = vst.msk [vmem:[#allocation3 + $0x8] sm:$0xff] %vm254, %v273
        %v276 = vsub.f32 %v260, 1.0
        %v277 = vsub.f32 %v261, 1.0
        %v278 = vld [vmem:[#allocation2 + $0x1] sm:$0x1]
        %v279 = vld [vmem:[#allocation3] sm:$0xff]
        %v280 = vld [vmem:[#allocation3 + $0x8] sm:$0xff]
        %v281 = vmul.f32 %v276, %v276
        %v282 = vmul.f32 %v277, %v277
        %v283 = vperm.slane %v278, 0
        %v284 = vadd.f32 %v281, %v283
        %v285 = vadd.f32 %v282, %v283
        %v286 = vmin.f32 %v279, %v284
        %v287 = vmin.f32 %v280, %v285
        %288 = vst.msk [vmem:[#allocation3] sm:$0xff] %vm254, %v286
        %289 = vst.msk [vmem:[#allocation3 + $0x8] sm:$0xff] %vm254, %v287
        %v290 = vsub.f32 %v260, 2.0
        %v291 = vsub.f32 %v261, 2.0
        %v292 = vld [vmem:[#allocation2 + $0x2] sm:$0x1]
        %v293 = vld [vmem:[#allocation3] sm:$0xff]
        %v294 = vld [vmem:[#allocation3 + $0x8] sm:$0xff]
        %v295 = vmul.f32 %v290, %v290
        %v296 = vmul.f32 %v291, %v291
        %v297 = vperm.slane %v292, 0
        %v298 = vadd.f32 %v295, %v297
        %v299 = vadd.f32 %v296, %v297
        %v300 = vmin.f32 %v293, %v298
        %v301 = vmin.f32 %v294, %v299
        %302 = vst.msk [vmem:[#allocation3] sm:$0xff] %vm254, %v300
        %303 = vst.msk [vmem:[#allocation3 + $0x8] sm:$0xff] %vm254, %v301
        %v304 = vsub.f32 %v260, 3.0
        %v305 = vsub.f32 %v261, 3.0
        %v306 = vld [vmem:[#allocation2 + $0x3] sm:$0x1]
        %v307 = vld [vmem:[#allocation3] sm:$0xff]
        %v308 = vld [vmem:[#allocation3 + $0x8] sm:$0xff]
        %v309 = vmul.f32 %v304, %v304
        %v310 = vmul.f32 %v305, %v305
        %v311 = vperm.slane %v306, 0
        %v312 = vadd.f32 %v309, %v311
        %v313 = vadd.f32 %v310, %v311
        %v314 = vmin.f32 %v307, %v312
        %v315 = vmin.f32 %v308, %v313
        %316 = vst.msk [vmem:[#allocation3] sm:$0xff] %vm254, %v314
        %317 = vst.msk [vmem:[#allocation3 + $0x8] sm:$0xff] %vm254, %v315
        %v318 = vsub.f32 %v260, 4.0
        %v319 = vsub.f32 %v261, 4.0
        %v320 = vld [vmem:[#allocation2 + $0x4] sm:$0x1]
        %v321 = vld [vmem:[#allocation3] sm:$0xff]
        %v322 = vld [vmem:[#allocation3 + $0x8] sm:$0xff]
        %v323 = vmul.f32 %v318, %v318
        %v324 = vmul.f32 %v319, %v319
        %v325 = vperm.slane %v320, 0
        %v326 = vadd.f32 %v323, %v325
        %v327 = vadd.f32 %v324, %v325
        %v328 = vmin.f32 %v321, %v326
        %v329 = vmin.f32 %v322, %v327
        %330 = vst.msk [vmem:[#allocation3] sm:$0xff] %vm254, %v328
        %331 = vst.msk [vmem:[#allocation3 + $0x8] sm:$0xff] %vm254, %v329
        %v332 = vsub.f32 %v260, 5.0
        %v333 = vsub.f32 %v261, 5.0
        %v334 = vld [vmem:[#allocation2 + $0x5] sm:$0x1]
        %v335 = vld [vmem:[#allocation3] sm:$0xff]
        %v336 = vld [vmem:[#allocation3 + $0x8] sm:$0xff]
        %v337 = vmul.f32 %v332, %v332
        %v338 = vmul.f32 %v333, %v333
        %v339 = vperm.slane %v334, 0
        %v340 = vadd.f32 %v337, %v339
        %v341 = vadd.f32 %v338, %v339
        %v342 = vmin.f32 %v335, %v340
        %v343 = vmin.f32 %v336, %v341
        %344 = vst.msk [vmem:[#allocation3] sm:$0xff] %vm254, %v342
        %345 = vst.msk [vmem:[#allocation3 + $0x8] sm:$0xff] %vm254, %v343
        %v346 = vsub.f32 %v260, 6.0
        %v347 = vsub.f32 %v261, 6.0
        %v348 = vld [vmem:[#allocation2 + $0x6] sm:$0x1]
        %v349 = vld [vmem:[#allocation3] sm:$0xff]
        %v350 = vld [vmem:[#allocation3 + $0x8] sm:$0xff]
        %v351 = vmul.f32 %v346, %v346
        %v352 = vmul.f32 %v347, %v347
        %v353 = vperm.slane %v348, 0
        %v354 = vadd.f32 %v351, %v353
        %v355 = vadd.f32 %v352, %v353
        %v356 = vmin.f32 %v349, %v354
        %v357 = vmin.f32 %v350, %v355
        %358 = vst.msk [vmem:[#allocation3] sm:$0xff] %vm254, %v356
        %359 = vst.msk [vmem:[#allocation3 + $0x8] sm:$0xff] %vm254, %v357
        %v360 = vsub.f32 %v260, 7.0
        %v361 = vsub.f32 %v261, 7.0
        %v362 = vld [vmem:[#allocation2 + $0x7] sm:$0x1]
        %v363 = vld [vmem:[#allocation3] sm:$0xff]
        %v364 = vld [vmem:[#allocation3 + $0x8] sm:$0xff]
        %v365 = vmul.f32 %v360, %v360
        %v366 = vmul.f32 %v361, %v361
        %v367 = vperm.slane %v362, 0
        %v368 = vadd.f32 %v365, %v367
        %v369 = vadd.f32 %v366, %v367
        %v370 = vmin.f32 %v363, %v368
        %v371 = vmin.f32 %v364, %v369
        %372 = vst.msk [vmem:[#allocation3] sm:$0xff] %vm254, %v370
        %373 = vst.msk [vmem:[#allocation3 + $0x8] sm:$0xff] %vm254, %v371
        %v374 = vsub.f32 %v260, 8.0
        %v375 = vsub.f32 %v261, 8.0
        %v376 = vld [vmem:[#allocation2 + $0x8] sm:$0x1]
        %v377 = vld [vmem:[#allocation3] sm:$0xff]
        %v378 = vld [vmem:[#allocation3 + $0x8] sm:$0xff]
        %v379 = vmul.f32 %v374, %v374
        %v380 = vmul.f32 %v375, %v375
        %v381 = vperm.slane %v376, 0
        %v382 = vadd.f32 %v379, %v381
        %v383 = vadd.f32 %v380, %v381
        %v384 = vmin.f32 %v377, %v382
        %v385 = vmin.f32 %v378, %v383
        %386 = vst.msk [vmem:[#allocation3] sm:$0xff] %vm254, %v384
        %387 = vst.msk [vmem:[#allocation3 + $0x8] sm:$0xff] %vm254, %v385
        %v388 = vsub.f32 %v260, 9.0
        %v389 = vsub.f32 %v261, 9.0
        %v390 = vld [vmem:[#allocation2 + $0x9] sm:$0x1]
        %v391 = vld [vmem:[#allocation3] sm:$0xff]
        %v392 = vld [vmem:[#allocation3 + $0x8] sm:$0xff]
        %v393 = vmul.f32 %v388, %v388
        %v394 = vmul.f32 %v389, %v389
        %v395 = vperm.slane %v390, 0
        %v396 = vadd.f32 %v393, %v395
        %v397 = vadd.f32 %v394, %v395
        %v398 = vmin.f32 %v391, %v396
        %v399 = vmin.f32 %v392, %v397
        %400 = vst.msk [vmem:[#allocation3] sm:$0xff] %vm254, %v398
        %401 = vst.msk [vmem:[#allocation3 + $0x8] sm:$0xff] %vm254, %v399
        %v402 = vsub.f32 %v260, 10.0
        %v403 = vsub.f32 %v261, 10.0
        %v404 = vld [vmem:[#allocation2 + $0xa] sm:$0x1]
        %v405 = vld [vmem:[#allocation3] sm:$0xff]
        %v406 = vld [vmem:[#allocation3 + $0x8] sm:$0xff]
        %v407 = vmul.f32 %v402, %v402
        %v408 = vmul.f32 %v403, %v403
        %v409 = vperm.slane %v404, 0
        %v410 = vadd.f32 %v407, %v409
        %v411 = vadd.f32 %v408, %v409
        %v412 = vmin.f32 %v405, %v410
        %v413 = vmin.f32 %v406, %v411
        %414 = vst.msk [vmem:[#allocation3] sm:$0xff] %vm254, %v412
        %415 = vst.msk [vmem:[#allocation3 + $0x8] sm:$0xff] %vm254, %v413
        %v416 = vsub.f32 %v260, 11.0
        %v417 = vsub.f32 %v261, 11.0
        %v418 = vld [vmem:[#allocation2 + $0xb] sm:$0x1]
        %v419 = vld [vmem:[#allocation3] sm:$0xff]
        %v420 = vld [vmem:[#allocation3 + $0x8] sm:$0xff]
        %v421 = vmul.f32 %v416, %v416
        %v422 = vmul.f32 %v417, %v417
        %v423 = vperm.slane %v418, 0
        %v424 = vadd.f32 %v421, %v423
        %v425 = vadd.f32 %v422, %v423
        %v426 = vmin.f32 %v419, %v424
        %v427 = vmin.f32 %v420, %v425
        %428 = vst.msk [vmem:[#allocation3] sm:$0xff] %vm254, %v426
        %429 = vst.msk [vmem:[#allocation3 + $0x8] sm:$0xff] %vm254, %v427
        %v430 = vsub.f32 %v260, 12.0
        %v431 = vsub.f32 %v261, 12.0
        %v432 = vld [vmem:[#allocation2 + $0xc] sm:$0x1]
        %v433 = vld [vmem:[#allocation3] sm:$0xff]
        %v434 = vld [vmem:[#allocation3 + $0x8] sm:$0xff]
        %v435 = vmul.f32 %v430, %v430
        %v436 = vmul.f32 %v431, %v431
        %v437 = vperm.slane %v432, 0
        %v438 = vadd.f32 %v435, %v437
        %v439 = vadd.f32 %v436, %v437
        %v440 = vmin.f32 %v433, %v438
        %v441 = vmin.f32 %v434, %v439
        %442 = vst.msk [vmem:[#allocation3] sm:$0xff] %vm254, %v440
        %443 = vst.msk [vmem:[#allocation3 + $0x8] sm:$0xff] %vm254, %v441
        %v444 = vsub.f32 %v260, 13.0
        %v445 = vsub.f32 %v261, 13.0
        %v446 = vld [vmem:[#allocation2 + $0xd] sm:$0x1]
        %v447 = vld [vmem:[#allocation3] sm:$0xff]
        %v448 = vld [vmem:[#allocation3 + $0x8] sm:$0xff]
        %v449 = vmul.f32 %v444, %v444
        %v450 = vmul.f32 %v445, %v445
        %v451 = vperm.slane %v446, 0
        %v452 = vadd.f32 %v449, %v451
        %v453 = vadd.f32 %v450, %v451
        %v454 = vmin.f32 %v447, %v452
        %v455 = vmin.f32 %v448, %v453
        %456 = vst.msk [vmem:[#allocation3] sm:$0xff] %vm254, %v454
        %457 = vst.msk [vmem:[#allocation3 + $0x8] sm:$0xff] %vm254, %v455
        %v458 = vsub.f32 %v260, 14.0
        %v459 = vsub.f32 %v261, 14.0
        %v460 = vld [vmem:[#allocation2 + $0xe] sm:$0x1]
        %v461 = vld [vmem:[#allocation3] sm:$0xff]
        %v462 = vld [vmem:[#allocation3 + $0x8] sm:$0xff]
        %v463 = vmul.f32 %v458, %v458
        %v464 = vmul.f32 %v459, %v459
        %v465 = vperm.slane %v460, 0
        %v466 = vadd.f32 %v463, %v465
        %v467 = vadd.f32 %v464, %v465
        %v468 = vmin.f32 %v461, %v466
        %v469 = vmin.f32 %v462, %v467
        %470 = vst.msk [vmem:[#allocation3] sm:$0xff] %vm254, %v468
        %471 = vst.msk [vmem:[#allocation3 + $0x8] sm:$0xff] %vm254, %v469
        %v472 = vsub.f32 %v260, 15.0
        %v473 = vsub.f32 %v261, 15.0
        %v474 = vld [vmem:[#allocation2 + $0xf] sm:$0x1]
        %v475 = vld [vmem:[#allocation3] sm:$0xff]
        %v476 = vld [vmem:[#allocation3 + $0x8] sm:$0xff]
        %v477 = vmul.f32 %v472, %v472
        %v478 = vmul.f32 %v473, %v473
        %v479 = vperm.slane %v474, 0
        %v480 = vadd.f32 %v477, %v479
        %v481 = vadd.f32 %v478, %v479
        %v482 = vmin.f32 %v475, %v480
        %v483 = vmin.f32 %v476, %v481
        %484 = vst.msk [vmem:[#allocation3] sm:$0xff] %vm254, %v482
        %485 = vst.msk [vmem:[#allocation3 + $0x8] sm:$0xff] %vm254, %v483
        %v486 = vld [vmem:[#allocation3] sm:$0xff]
        %v487 = vld [vmem:[#allocation3 + $0x8] sm:$0xff]
        %488 = vxpose.xlu0.b32.start [1/16] %v486, 128
        %489 = vxpose.xlu0.b32.cont [2/16] %v487, 128
        %490 = vxpose.xlu0.b32.cont [3/16] 0.0, 128
        %491 = vxpose.xlu0.b32.cont [4/16] 0.0, 128
        %492 = vxpose.xlu0.b32.cont [5/16] 0.0, 128
        %493 = vxpose.xlu0.b32.cont [6/16] 0.0, 128
        %494 = vxpose.xlu0.b32.cont [7/16] 0.0, 128
        %495 = vxpose.xlu0.b32.cont [8/16] 0.0, 128
        %496 = vxpose.xlu0.b32.cont [9/16] 0.0, 128
        %497 = vxpose.xlu0.b32.cont [10/16] 0.0, 128
        %498 = vxpose.xlu0.b32.cont [11/16] 0.0, 128
        %499 = vxpose.xlu0.b32.cont [12/16] 0.0, 128
        %500 = vxpose.xlu0.b32.cont [13/16] 0.0, 128
        %501 = vxpose.xlu0.b32.cont [14/16] 0.0, 128
        %502 = vxpose.xlu0.b32.cont [15/16] 0.0, 128
        %503 = vxpose.xlu0.b32.end [16/16] 0.0, 128
        %v504 = vpop.trf.xlu0
        %v505 = vpop.trf.xlu0
        %v506 = vpop.trf.xlu0
        %v507 = vpop.trf.xlu0
        %v508 = vpop.trf.xlu0
        %v509 = vpop.trf.xlu0
        %v510 = vpop.trf.xlu0
        %v511 = vpop.trf.xlu0
        %v512 = vpop.trf.xlu0
        %v513 = vpop.trf.xlu0
        %v514 = vpop.trf.xlu0
        %v515 = vpop.trf.xlu0
        %v516 = vpop.trf.xlu0
        %v517 = vpop.trf.xlu0
        %v518 = vpop.trf.xlu0
        %v519 = vpop.trf.xlu0
        %522 = vrot.lane.b32.xlu0 %v506, 16
        %v523 = vpop.permute.xlu0 %522
        %524 = vrot.lane.b32.xlu0 %v507, 16
        %v525 = vpop.permute.xlu0 %524
        %530 = vrot.lane.b32.xlu0 %v508, 32
        %v531 = vpop.permute.xlu0 %530
        %532 = vrot.lane.b32.xlu0 %v509, 32
        %v533 = vpop.permute.xlu0 %532
        %538 = vrot.lane.b32.xlu0 %v510, 48
        %v539 = vpop.permute.xlu0 %538
        %540 = vrot.lane.b32.xlu0 %v511, 48
        %v541 = vpop.permute.xlu0 %540
        %v544 = vsel %vm245, %v504, %v523
        %v545 = vsel %vm245, %v505, %v525
        %v546 = vsel %vm248, %v544, %v531
        %v547 = vsel %vm248, %v545, %v533
        %v548 = vsel %vm251, %v546, %v539
        %v549 = vsel %vm251, %v547, %v541
        %550 = vst.msk [vmem:[#allocation4] sm:$0xff] %vm254, %v548
        %551 = vst.msk [vmem:[#allocation4 + $0x8] sm:$0xff] %vm254, %v549
        %552 = vst.msk [vmem:[#allocation5] sm:$0xff] %vm254, 1e+30
        %553 = vst.msk [vmem:[#allocation5 + $0x8] sm:$0xff] %vm254, 1e+30
        %v554 = vld [vmem:[#allocation4] sm:$0x1]
        %v555 = vld [vmem:[#allocation5] sm:$0xff]
        %v556 = vld [vmem:[#allocation5 + $0x8] sm:$0xff]
        %v557 = vperm.slane %v554, 0
        %v558 = vadd.f32 %v267, %v557
        %v559 = vadd.f32 %v268, %v557
        %v560 = vmin.f32 %v555, %v558
        %v561 = vmin.f32 %v556, %v559
        %562 = vst.msk [vmem:[#allocation5] sm:$0xff] %vm254, %v560
        %563 = vst.msk [vmem:[#allocation5 + $0x8] sm:$0xff] %vm254, %v561
        %v564 = vld [vmem:[#allocation4 + $0x1] sm:$0x1]
        %v565 = vld [vmem:[#allocation5] sm:$0xff]
        %v566 = vld [vmem:[#allocation5 + $0x8] sm:$0xff]
        %v567 = vperm.slane %v564, 0
        %v568 = vadd.f32 %v281, %v567
        %v569 = vadd.f32 %v282, %v567
        %v570 = vmin.f32 %v565, %v568
        %v571 = vmin.f32 %v566, %v569
        %572 = vst.msk [vmem:[#allocation5] sm:$0xff] %vm254, %v570
        %573 = vst.msk [vmem:[#allocation5 + $0x8] sm:$0xff] %vm254, %v571
        %v574 = vld [vmem:[#allocation4 + $0x2] sm:$0x1]
        %v575 = vld [vmem:[#allocation5] sm:$0xff]
        %v576 = vld [vmem:[#allocation5 + $0x8] sm:$0xff]
        %v577 = vperm.slane %v574, 0
        %v578 = vadd.f32 %v295, %v577
        %v579 = vadd.f32 %v296, %v577
        %v580 = vmin.f32 %v575, %v578
        %v581 = vmin.f32 %v576, %v579
        %582 = vst.msk [vmem:[#allocation5] sm:$0xff] %vm254, %v580
        %583 = vst.msk [vmem:[#allocation5 + $0x8] sm:$0xff] %vm254, %v581
        %v584 = vld [vmem:[#allocation4 + $0x3] sm:$0x1]
        %v585 = vld [vmem:[#allocation5] sm:$0xff]
        %v586 = vld [vmem:[#allocation5 + $0x8] sm:$0xff]
        %v587 = vperm.slane %v584, 0
        %v588 = vadd.f32 %v309, %v587
        %v589 = vadd.f32 %v310, %v587
        %v590 = vmin.f32 %v585, %v588
        %v591 = vmin.f32 %v586, %v589
        %592 = vst.msk [vmem:[#allocation5] sm:$0xff] %vm254, %v590
        %593 = vst.msk [vmem:[#allocation5 + $0x8] sm:$0xff] %vm254, %v591
        %v594 = vld [vmem:[#allocation4 + $0x4] sm:$0x1]
        %v595 = vld [vmem:[#allocation5] sm:$0xff]
        %v596 = vld [vmem:[#allocation5 + $0x8] sm:$0xff]
        %v597 = vperm.slane %v594, 0
        %v598 = vadd.f32 %v323, %v597
        %v599 = vadd.f32 %v324, %v597
        %v600 = vmin.f32 %v595, %v598
        %v601 = vmin.f32 %v596, %v599
        %602 = vst.msk [vmem:[#allocation5] sm:$0xff] %vm254, %v600
        %603 = vst.msk [vmem:[#allocation5 + $0x8] sm:$0xff] %vm254, %v601
        %v604 = vld [vmem:[#allocation4 + $0x5] sm:$0x1]
        %v605 = vld [vmem:[#allocation5] sm:$0xff]
        %v606 = vld [vmem:[#allocation5 + $0x8] sm:$0xff]
        %v607 = vperm.slane %v604, 0
        %v608 = vadd.f32 %v337, %v607
        %v609 = vadd.f32 %v338, %v607
        %v610 = vmin.f32 %v605, %v608
        %v611 = vmin.f32 %v606, %v609
        %612 = vst.msk [vmem:[#allocation5] sm:$0xff] %vm254, %v610
        %613 = vst.msk [vmem:[#allocation5 + $0x8] sm:$0xff] %vm254, %v611
        %v614 = vld [vmem:[#allocation4 + $0x6] sm:$0x1]
        %v615 = vld [vmem:[#allocation5] sm:$0xff]
        %v616 = vld [vmem:[#allocation5 + $0x8] sm:$0xff]
        %v617 = vperm.slane %v614, 0
        %v618 = vadd.f32 %v351, %v617
        %v619 = vadd.f32 %v352, %v617
        %v620 = vmin.f32 %v615, %v618
        %v621 = vmin.f32 %v616, %v619
        %622 = vst.msk [vmem:[#allocation5] sm:$0xff] %vm254, %v620
        %623 = vst.msk [vmem:[#allocation5 + $0x8] sm:$0xff] %vm254, %v621
        %v624 = vld [vmem:[#allocation4 + $0x7] sm:$0x1]
        %v625 = vld [vmem:[#allocation5] sm:$0xff]
        %v626 = vld [vmem:[#allocation5 + $0x8] sm:$0xff]
        %v627 = vperm.slane %v624, 0
        %v628 = vadd.f32 %v365, %v627
        %v629 = vadd.f32 %v366, %v627
        %v630 = vmin.f32 %v625, %v628
        %v631 = vmin.f32 %v626, %v629
        %632 = vst.msk [vmem:[#allocation5] sm:$0xff] %vm254, %v630
        %633 = vst.msk [vmem:[#allocation5 + $0x8] sm:$0xff] %vm254, %v631
        %v634 = vld [vmem:[#allocation4 + $0x8] sm:$0x1]
        %v635 = vld [vmem:[#allocation5] sm:$0xff]
        %v636 = vld [vmem:[#allocation5 + $0x8] sm:$0xff]
        %v637 = vperm.slane %v634, 0
        %v638 = vadd.f32 %v379, %v637
        %v639 = vadd.f32 %v380, %v637
        %v640 = vmin.f32 %v635, %v638
        %v641 = vmin.f32 %v636, %v639
        %642 = vst.msk [vmem:[#allocation5] sm:$0xff] %vm254, %v640
        %643 = vst.msk [vmem:[#allocation5 + $0x8] sm:$0xff] %vm254, %v641
        %v644 = vld [vmem:[#allocation4 + $0x9] sm:$0x1]
        %v645 = vld [vmem:[#allocation5] sm:$0xff]
        %v646 = vld [vmem:[#allocation5 + $0x8] sm:$0xff]
        %v647 = vperm.slane %v644, 0
        %v648 = vadd.f32 %v393, %v647
        %v649 = vadd.f32 %v394, %v647
        %v650 = vmin.f32 %v645, %v648
        %v651 = vmin.f32 %v646, %v649
        %652 = vst.msk [vmem:[#allocation5] sm:$0xff] %vm254, %v650
        %653 = vst.msk [vmem:[#allocation5 + $0x8] sm:$0xff] %vm254, %v651
        %v654 = vld [vmem:[#allocation4 + $0xa] sm:$0x1]
        %v655 = vld [vmem:[#allocation5] sm:$0xff]
        %v656 = vld [vmem:[#allocation5 + $0x8] sm:$0xff]
        %v657 = vperm.slane %v654, 0
        %v658 = vadd.f32 %v407, %v657
        %v659 = vadd.f32 %v408, %v657
        %v660 = vmin.f32 %v655, %v658
        %v661 = vmin.f32 %v656, %v659
        %662 = vst.msk [vmem:[#allocation5] sm:$0xff] %vm254, %v660
        %663 = vst.msk [vmem:[#allocation5 + $0x8] sm:$0xff] %vm254, %v661
        %v664 = vld [vmem:[#allocation4 + $0xb] sm:$0x1]
        %v665 = vld [vmem:[#allocation5] sm:$0xff]
        %v666 = vld [vmem:[#allocation5 + $0x8] sm:$0xff]
        %v667 = vperm.slane %v664, 0
        %v668 = vadd.f32 %v421, %v667
        %v669 = vadd.f32 %v422, %v667
        %v670 = vmin.f32 %v665, %v668
        %v671 = vmin.f32 %v666, %v669
        %672 = vst.msk [vmem:[#allocation5] sm:$0xff] %vm254, %v670
        %673 = vst.msk [vmem:[#allocation5 + $0x8] sm:$0xff] %vm254, %v671
        %v674 = vld [vmem:[#allocation4 + $0xc] sm:$0x1]
        %v675 = vld [vmem:[#allocation5] sm:$0xff]
        %v676 = vld [vmem:[#allocation5 + $0x8] sm:$0xff]
        %v677 = vperm.slane %v674, 0
        %v678 = vadd.f32 %v435, %v677
        %v679 = vadd.f32 %v436, %v677
        %v680 = vmin.f32 %v675, %v678
        %v681 = vmin.f32 %v676, %v679
        %682 = vst.msk [vmem:[#allocation5] sm:$0xff] %vm254, %v680
        %683 = vst.msk [vmem:[#allocation5 + $0x8] sm:$0xff] %vm254, %v681
        %v684 = vld [vmem:[#allocation4 + $0xd] sm:$0x1]
        %v685 = vld [vmem:[#allocation5] sm:$0xff]
        %v686 = vld [vmem:[#allocation5 + $0x8] sm:$0xff]
        %v687 = vperm.slane %v684, 0
        %v688 = vadd.f32 %v449, %v687
        %v689 = vadd.f32 %v450, %v687
        %v690 = vmin.f32 %v685, %v688
        %v691 = vmin.f32 %v686, %v689
        %692 = vst.msk [vmem:[#allocation5] sm:$0xff] %vm254, %v690
        %693 = vst.msk [vmem:[#allocation5 + $0x8] sm:$0xff] %vm254, %v691
        %v694 = vld [vmem:[#allocation4 + $0xe] sm:$0x1]
        %v695 = vld [vmem:[#allocation5] sm:$0xff]
        %v696 = vld [vmem:[#allocation5 + $0x8] sm:$0xff]
        %v697 = vperm.slane %v694, 0
        %v698 = vadd.f32 %v463, %v697
        %v699 = vadd.f32 %v464, %v697
        %v700 = vmin.f32 %v695, %v698
        %v701 = vmin.f32 %v696, %v699
        %702 = vst.msk [vmem:[#allocation5] sm:$0xff] %vm254, %v700
        %703 = vst.msk [vmem:[#allocation5 + $0x8] sm:$0xff] %vm254, %v701
        %v704 = vld [vmem:[#allocation4 + $0xf] sm:$0x1]
        %v705 = vld [vmem:[#allocation5] sm:$0xff]
        %v706 = vld [vmem:[#allocation5 + $0x8] sm:$0xff]
        %v707 = vperm.slane %v704, 0
        %v708 = vadd.f32 %v477, %v707
        %v709 = vadd.f32 %v478, %v707
        %v710 = vmin.f32 %v705, %v708
        %v711 = vmin.f32 %v706, %v709
        %712 = vst.msk [vmem:[#allocation5] sm:$0xff] %vm254, %v710
        %713 = vst.msk [vmem:[#allocation5 + $0x8] sm:$0xff] %vm254, %v711
        %v714 = vld [vmem:[#allocation5] sm:$0xff]
        %v715 = vld [vmem:[#allocation5 + $0x8] sm:$0xff]
        %vm716 = vcmp.lt.f32.partialorder %v714, 1e+29
        %vm717 = vcmp.lt.f32.partialorder %v715, 1e+29
        %v718 = vsel %vm716, %v714, 0.0
        %v719 = vsel %vm717, %v715, 0.0
        %v720 = vsub.f32 %v205, %v207
        %v721 = vsub.f32 %v206, %v208
        %v722 = vmul.f32 %v720, %v720
        %v723 = vmul.f32 %v721, %v721
        %724 = vxpose.xlu0.b32.start [1/16] %v722, 128
        %725 = vxpose.xlu0.b32.cont [2/16] %v723, 128
        %726 = vxpose.xlu0.b32.cont [3/16] 0.0, 128
        %727 = vxpose.xlu0.b32.cont [4/16] 0.0, 128
        %728 = vxpose.xlu0.b32.cont [5/16] 0.0, 128
        %729 = vxpose.xlu0.b32.cont [6/16] 0.0, 128
        %730 = vxpose.xlu0.b32.cont [7/16] 0.0, 128
        %731 = vxpose.xlu0.b32.cont [8/16] 0.0, 128
        %732 = vxpose.xlu0.b32.cont [9/16] 0.0, 128
        %733 = vxpose.xlu0.b32.cont [10/16] 0.0, 128
        %734 = vxpose.xlu0.b32.cont [11/16] 0.0, 128
        %735 = vxpose.xlu0.b32.cont [12/16] 0.0, 128
        %736 = vxpose.xlu0.b32.cont [13/16] 0.0, 128
        %737 = vxpose.xlu0.b32.cont [14/16] 0.0, 128
        %738 = vxpose.xlu0.b32.cont [15/16] 0.0, 128
        %739 = vxpose.xlu0.b32.end [16/16] 0.0, 128
        %v740 = vpop.trf.xlu0
        %v741 = vpop.trf.xlu0
        %v742 = vpop.trf.xlu0
        %v743 = vpop.trf.xlu0
        %v744 = vpop.trf.xlu0
        %v745 = vpop.trf.xlu0
        %v746 = vpop.trf.xlu0
        %v747 = vpop.trf.xlu0
        %v748 = vpop.trf.xlu0
        %v749 = vpop.trf.xlu0
        %v750 = vpop.trf.xlu0
        %v751 = vpop.trf.xlu0
        %v752 = vpop.trf.xlu0
        %v753 = vpop.trf.xlu0
        %v754 = vpop.trf.xlu0
        %v755 = vpop.trf.xlu0
        %758 = vrot.lane.b32.xlu0 %v740, 16
        %v759 = vpop.permute.xlu0 %758
        %760 = vrot.lane.b32.xlu0 %v741, 16
        %v761 = vpop.permute.xlu0 %760
        %764 = vrot.lane.b32.xlu0 %v740, 32
        %v765 = vpop.permute.xlu0 %764
        %766 = vrot.lane.b32.xlu0 %v741, 32
        %v767 = vpop.permute.xlu0 %766
        %770 = vrot.lane.b32.xlu0 %v740, 48
        %v771 = vpop.permute.xlu0 %770
        %772 = vrot.lane.b32.xlu0 %v741, 48
        %v773 = vpop.permute.xlu0 %772
        %v776 = vsel %vm245, %v740, %v759
        %v777 = vsel %vm245, %v741, %v761
        %v778 = vsel %vm248, %v776, %v765
        %v779 = vsel %vm248, %v777, %v767
        %v780 = vsel %vm251, %v778, %v771
        %v781 = vsel %vm251, %v779, %v773
        %v782 = vmul.f32 %v780, %v718
        %v783 = vmul.f32 %v781, %v719
        %v784 = vsel %vm254, %v782, 0.0
        %v785 = vsel %vm254, %v783, 0.0
        %v786 = vadd.f32 %v784, %v785
        %787 = vadd.xlane.f32.xlu0 %v786
        %v788 = vpop.xlane.xlu0 %787
        %v789 = vrot.slane %v788, 4
        %v790 = vadd.f32 %v788, %v789
        %v791 = vrot.slane %v790, 2
        %v792 = vadd.f32 %v790, %v791
        %v793 = vrot.slane %v792, 1
        %v794 = vadd.f32 %v792, %v793
        %s795 = vtos %v794
        %v796 = vstv %s795
        %797 = vst [vmem:[%s204] sm:$0x1] %v796
        %s798 = sand.u32 %s82, 1
        %s799 = scalar_lea.sflag [#allocation8], %s798
        %s800 = sand.u32 %s82, 1
        %s801 = scalar_lea.vmem [#allocation11], %s800
        // Predicated region
        $region37: #{tpu_custom_call.1} parent=27 // pred_check
          %p802 = pneg %p92
        $region38: #{tpu_custom_call.1} parent=27 // pred_check_branch
          %804 = sbr.rel (%p802) target = $region40
        $region39: #{tpu_custom_call.1} parent=27 // pred_region
          %806 = vsyncadd %s799, 0
          %s807 = scalar_lea.hbm %s2, %s22
          %s809 = sshll.u32 %s801, 4
          %s810 = int_to_ptr.vmem [resolvable:$true] %s809
          %s811 = sshll.u32 %s807, 4
          %s812 = int_to_ptr.hbm [resolvable:$true] %s811
          %814 = dma.vmem_to_hbm [thread:$0]  %s810, 16, %s812, %s799
        $region40: #{tpu_custom_call.1} parent=27 // pred_fallthru
          _
      $region28: #{tpu_custom_call.1} parent=5 // pred_fallthru
        _
      %p815 = scmp.le.s32.totalorder 2, %s17
      // Predicated region
      $region41: #{tpu_custom_call.1} parent=5 // pred_check
        %p816 = pneg %p815
      $region42: #{tpu_custom_call.1} parent=5 // pred_check_branch
        %818 = sbr.rel (%p816) target = $region44
      $region43: #{tpu_custom_call.1} parent=5 // pred_region
        %s819 = ssub.s32 %s17, 2
        // Predicated region
        $region45: #{tpu_custom_call.1} parent=43 // pred_check
          %p820 = pneg %p98
        $region46: #{tpu_custom_call.1} parent=43 // pred_check_branch
          %822 = sbr.rel (%p820) target = $region48
        $region47: #{tpu_custom_call.1} parent=43 // pred_region
          %s823 = sand.u32 %s83, 1
          %s824 = scalar_lea.sflag [#allocation8], %s823
          %s825 = sand.u32 %s83, 1
          %s826 = scalar_lea.vmem [#allocation11], %s825
          %828 = dma.done %s824, 16
        $region48: #{tpu_custom_call.1} parent=43 // pred_fallthru
          _
      $region44: #{tpu_custom_call.1} parent=5 // pred_fallthru
        _
    $region6: #{tpu_custom_call.1} parent=1 // loop_footer
      %s21 = sadd.s32 1, %s17
    $region7: #{tpu_custom_call.1} parent=1 // loop_footer_branch
      %16 = sbr.rel target = $region3
    $region8: #{tpu_custom_call.1} parent=1 // loop_exit
      _
    %829 = vsyncpa [#allocation7], 1
    %s830 = scalar_lea.sflag [#allocation7], 1
    %831 = vsyncpa %s830, 1
    %832 = vsyncpa [#allocation10], 1
    %s833 = scalar_lea.sflag [#allocation10], 1
    %834 = vsyncpa %s833, 1
    %835 = vsyncpa [#allocation8], 1
    %s836 = scalar_lea.sflag [#allocation8], 1
    %837 = vsyncpa %s836, 1

</llo_original>
